<compile_context>
chip_gen: v6e
topology: v6e:2x2x1
jax: 0.10.0
libtpu: 0.0.40
codegen_flags: <defaults>
</compile_context>

<pallas_src>
import math

import jax
import jax.numpy as jnp
from jax.experimental import pallas as pl
from jax.experimental.pallas import tpu as pltpu

F1, F2, F3 = 64, 128, 1024      # encoder layer widths
KPAD = 8                        # pointcloud channel dim padded 3 -> 8 for the first matmul


# ----------------------------- kernel helpers -----------------------------

def _dense(x, w_ref, b_ref, relu=True):
    """x @ W + b with f32 MXU accumulation; x is cast to the weight dtype (bf16/f32)."""
    y = jnp.dot(x.astype(w_ref.dtype), w_ref[...],
                preferred_element_type=jnp.float32) + b_ref[...]
    return jnp.maximum(y, 0.0) if relu else y


def _make_encoder_kernel(tn):
    sublane_acc = (tn % 8 == 0)

    def kernel(pc_ref, w1, b1, w2, b2, w3, b3, pooled_ref, acc_ref):
        nt = pl.program_id(1)

        @pl.when(nt == 0)
        def _():
            acc_ref[...] = jnp.full_like(acc_ref, -jnp.inf)

        x = pc_ref[0]                                   # (TN, KPAD)
        h = _dense(x, w1, b1)                           # (TN, 64)
        h = _dense(h, w2, b2)                           # (TN, 128)
        # Layer 3: matmul only.  Bias + ReLU are hoisted to the epilogue (exact:
        # per-channel bias and monotone ReLU commute with max over points).
        h3 = jnp.dot(h.astype(w3.dtype), w3[...],
                     preferred_element_type=jnp.float32)               # (TN, 1024) f32

        if sublane_acc:
            # Fold TN rows into 8 sublane rows with elementwise maxes (VPU work only).
            part = jnp.max(h3.reshape(tn // 8, 8, h3.shape[-1]), axis=0)   # (8, 1024)
        else:
            part = jnp.max(h3, axis=0, keepdims=True)                      # (1, 1024) bcast
        acc_ref[...] = jnp.maximum(acc_ref[...], part)

        @pl.when(nt == pl.num_programs(1) - 1)
        def _():
            # Single cross-sublane (XLU) reduce + hoisted bias/ReLU, once per batch element.
            m = jnp.max(acc_ref[...], axis=0, keepdims=True)               # (1, 1024)
            pooled_ref[0] = jnp.maximum(m + b3[...], 0.0)

    return kernel


def _hidden_mlp_kernel(pooled_ref, w4, b4, w5, b5, w6, b6, f_ref):
    # Decoder hidden MLP (1024 -> N/4 -> N/2 -> N), batched over B (M = B), computed once.
    f = _dense(pooled_ref[...], w4, b4)                 # (B, N/4)
    f = _dense(f, w5, b5)                               # (B, N/2)
    f = _dense(f, w6, b6)                               # (B, N)   dropout = identity (eval)
    f_ref[...] = f


def _w7_stream_kernel(f_ref, w7, b7, out_ref):
    # Final (N x 3N) layer, one output tile of w7 per grid step; no relu.
    out_ref[...] = _dense(f_ref[...], w7, b7, relu=False)                 # (B, TOUT)


# ----------------------------- wrappers (glue) -----------------------------

def _const_spec(shape):
    zeros = (0,) * len(shape)
    return pl.BlockSpec(shape, lambda *_: zeros)


def _choose_divisor_tile(total, candidates):
    for c in candidates:
        if c < total and total % c == 0:
            return c
    return total


def _nbytes(shape, dtype):
    return math.prod(shape) * jnp.dtype(dtype).itemsize


def _vmem_capacity_bytes():
    try:
        info = pltpu.get_tpu_info()
        cap = getattr(info, "vmem_capacity_bytes", None)
        if cap:
            return int(cap)
    except Exception:
        pass
    return 64 << 20   # conservative fallback (v7x per-TC VMEM)


def _vmem_limit(block_nbytes):
    # x2 for double-buffering, plus headroom; leave >=16 MiB for Mosaic internal scratch.
    cap = _vmem_capacity_bytes()
    ceiling = max(cap - (16 << 20), 32 << 20)
    need = 2 * int(sum(block_nbytes)) + (8 << 20)
    return int(min(max(need, 16 << 20), ceiling))


def _encoder_tile_candidates():
    # Bigger tiles amortize the ~0.35 us per-grid-step overhead; cap at 2048 on 64 MiB VMEM.
    if _vmem_capacity_bytes() >= (100 << 20):           # v5e / v6e (128 MiB)
        return (4096, 2048, 1024, 512, 256, 128)
    return (2048, 1024, 512, 256, 128)                  # v7x (64 MiB / TC)


def _choose_out_tile(out_total, n, itemsize):
    budget = max((_vmem_capacity_bytes() - (16 << 20)) // 3, 8 << 20)
    for c in (2048, 1024, 512, 256, 128):
        if c < out_total and out_total % c == 0 and 2 * n * c * itemsize <= budget:
            return c
    return out_total


def _encode(pointcloud, enc_params, compute_dtype):
    B, N, C = pointcloud.shape
    TN = _choose_divisor_tile(N, _encoder_tile_candidates())
    n_tiles = N // TN

    (w1, b1), (w2, b2), (w3, b3) = enc_params
    # Pad channel dim 3 -> 8 (zeros) so the first matmul has a sane contraction dim.
    pc_p = jnp.pad(pointcloud, ((0, 0), (0, 0), (0, KPAD - C))).astype(compute_dtype)
    w1p = jnp.pad(w1, ((0, KPAD - w1.shape[0]), (0, 0))).astype(compute_dtype)
    w2c = w2.astype(compute_dtype)
    w3c = w3.astype(compute_dtype)

    flat = [w1p, b1, w2c, b2, w3c, b3]
    in_specs = [pl.BlockSpec((1, TN, KPAD), lambda b, nt: (b, nt, 0))]
    in_specs += [_const_spec(p.shape) for p in flat]

    block_bytes = (
        [_nbytes((1, TN, KPAD), compute_dtype)]
        + [p.size * p.dtype.itemsize for p in flat]
        + [_nbytes((1, 1, F3), jnp.float32),
           _nbytes((8, F3), jnp.float32),
           2 * _nbytes((TN, F3), jnp.float32)]          # rough live-activation bound (h3)
    )

    pooled = pl.pallas_call(
        _make_encoder_kernel(TN),
        out_shape=jax.ShapeDtypeStruct((B, 1, F3), jnp.float32),
        grid=(B, n_tiles),
        in_specs=in_specs,
        out_specs=pl.BlockSpec((1, 1, F3), lambda b, nt: (b, 0, 0)),
        scratch_shapes=[pltpu.VMEM((8, F3), jnp.float32)],
        compiler_params=pltpu.CompilerParams(
            dimension_semantics=("parallel", "arbitrary"),
            vmem_limit_bytes=_vmem_limit(block_bytes)),
    )(pc_p, *flat)

    return pooled.reshape(B, F3)


def _decode(pooled, dec_params, N, compute_dtype, out_tile=None):
    B = pooled.shape[0]
    OUT = 3 * N

    (w4, b4), (w5, b5), (w6, b6), (w7, b7) = dec_params
    w4c, w5c, w6c, w7c = (w.astype(compute_dtype) for w in (w4, w5, w6, w7))

    # --- Stage 1: tiny hidden MLP, computed once (decoupled from the w7 stream). ---
    hidden = [pooled.astype(compute_dtype), w4c, b4, w5c, b5, w6c, b6]
    hid_bytes = [p.size * p.dtype.itemsize for p in hidden] + [_nbytes((B, N), jnp.float32)]
    f = pl.pallas_call(
        _hidden_mlp_kernel,
        out_shape=jax.ShapeDtypeStruct((B, N), jnp.float32),
        grid=(1,),
        in_specs=[_const_spec(p.shape) for p in hidden],
        out_specs=_const_spec((B, N)),
        compiler_params=pltpu.CompilerParams(
            dimension_semantics=("arbitrary",),
            vmem_limit_bytes=_vmem_limit(hid_bytes)),
    )(*hidden)

    # --- Stage 2: stream the (N x 3N) w7 weight by output tile; megacore-parallel. ---
    if out_tile is None:
        out_tile = _choose_out_tile(OUT, N, jnp.dtype(compute_dtype).itemsize)
    n_out_tiles = OUT // out_tile

    in_specs = [
        _const_spec((B, N)),                                   # f, grid-invariant, M = B
        pl.BlockSpec((N, out_tile), lambda t: (0, t)),         # stream w7 by output tile
        pl.BlockSpec((1, out_tile), lambda t: (0, t)),
    ]
    block_bytes = [
        _nbytes((B, N), jnp.float32),
        _nbytes((N, out_tile), compute_dtype), _nbytes((1, out_tile), jnp.float32),
        _nbytes((B, out_tile), jnp.float32),
    ]

    out = pl.pallas_call(
        _w7_stream_kernel,
        out_shape=jax.ShapeDtypeStruct((B, OUT), jnp.float32),
        grid=(n_out_tiles,),
        in_specs=in_specs,
        out_specs=pl.BlockSpec((B, out_tile), lambda t: (0, t)),
        compiler_params=pltpu.CompilerParams(
            dimension_semantics=("parallel",),
            vmem_limit_bytes=_vmem_limit(block_bytes)),
    )(f, w7c, b7)
    return out


def pointnet_autoencoder(pointcloud, params, *, compute_dtype=jnp.bfloat16):
    """pointcloud: [B, N, 3] float32.  Returns [B, N, 3] float32 (eval-mode forward)."""
    B, N, _ = pointcloud.shape
    pooled = _encode(pointcloud, params[:3], compute_dtype)          # [B, 1024]
    out = _decode(pooled, params[3:], N, compute_dtype)              # [B, 3N]
    # Same row-major reshape as torch: [B, 3N] -> [B, N, 3]
    return out.reshape(B, N, 3)


# ---------------- deterministic parameter construction (glue) ----------------

def _make_layer(key, cin, cout, with_bn=True, eps=1e-5):
    """Effective [cin, cout] weight and [1, cout] bias with eval-mode BN folded in."""
    kw, kb, kg, kbt, km, kv = jax.random.split(key, 6)
    W = jax.random.normal(kw, (cout, cin), jnp.float32) / jnp.sqrt(cin)   # torch Linear [out, in]
    b = 0.1 * jax.random.normal(kb, (cout,), jnp.float32)
    if with_bn:
        gamma = 1.0 + 0.1 * jax.random.normal(kg, (cout,), jnp.float32)
        beta = 0.1 * jax.random.normal(kbt, (cout,), jnp.float32)
        mean = 0.1 * jax.random.normal(km, (cout,), jnp.float32)
        var = 0.9 + 0.1 * jnp.abs(jax.random.normal(kv, (cout,), jnp.float32))
        s = gamma / jnp.sqrt(var + eps)
        t = beta - mean * s
    else:
        s = jnp.ones((cout,), jnp.float32)
        t = jnp.zeros((cout,), jnp.float32)
    W_eff = (W.T * s[None, :]).astype(jnp.float32)          # [cin, cout]
    b_eff = (b * s + t).astype(jnp.float32).reshape(1, cout)
    return W_eff, b_eff


def make_params(num_points, key):
    N = num_points
    dims = [(3, 64, True), (64, 128, True), (128, 1024, True),
            (1024, N // 4, True), (N // 4, N // 2, True), (N // 2, N, True),
            (N, 3 * N, False)]
    keys = jax.random.split(key, len(dims))
    return [_make_layer(k, cin, cout, bn) for k, (cin, cout, bn) in zip(keys, dims)]


# ---------------- pure-JAX reference for validation ----------------

def reference_forward(pc, params):
    (w1, b1), (w2, b2), (w3, b3), (w4, b4), (w5, b5), (w6, b6), (w7, b7) = params
    hp = jax.lax.Precision.HIGHEST
    relu = lambda z: jnp.maximum(z, 0.0)
    h = relu(jnp.einsum('bnc,cd->bnd', pc, w1, precision=hp) + b1)
    h = relu(jnp.einsum('bnc,cd->bnd', h, w2, precision=hp) + b2)
    h = relu(jnp.einsum('bnc,cd->bnd', h, w3, precision=hp) + b3)
    pooled = jnp.max(h, axis=1)                                   # [B, 1024]
    f = relu(jnp.dot(pooled, w4, precision=hp) + b4)
    f = relu(jnp.dot(f, w5, precision=hp) + b5)
    f = relu(jnp.dot(f, w6, precision=hp) + b6)
    f = jnp.dot(f, w7, precision=hp) + b7
    return f.reshape(pc.shape[0], pc.shape[1], 3)


if __name__ == "__main__":
    B = 2
    num_points = 16            # N; decoder dims N/4=4, N/2=8, 3N=48

    key = jax.random.PRNGKey(0)
    k_in, k_par = jax.random.split(key)
    pointcloud = jax.random.normal(k_in, (B, num_points, 3), jnp.float32)
    params = make_params(num_points, k_par)

    ref = reference_forward(pointcloud, params)

    # f32 path (strict check; MXU default precision vs HIGHEST reference -> loose-ish tol).
    out = pointnet_autoencoder(pointcloud, params, compute_dtype=jnp.float32)
    out = jax.block_until_ready(out)
    assert out.shape == (B, num_points, 3), out.shape
    assert jnp.allclose(out, ref, rtol=2e-2, atol=2e-2), float(jnp.max(jnp.abs(out - ref)))

    # bf16 compute path (production default): f32 accumulation, looser tolerance.
    out_bf16 = pointnet_autoencoder(pointcloud, params)
    out_bf16 = jax.block_until_ready(out_bf16)
    assert out_bf16.shape == (B, num_points, 3), out_bf16.shape
    assert jnp.allclose(out_bf16, ref, rtol=1e-1, atol=3e-1), (
        float(jnp.max(jnp.abs(out_bf16 - ref))))

    print("KERNEL_OK")
</pallas_src>

<mosaic_0001>
module attributes {stable_mosaic.version = 11 : i64} {
  func.func @kernel(%arg0: i32, %arg1: i32, %arg2: memref<1x16x8xf32, #tpu.memory_space<vmem>>, %arg3: memref<8x64xf32, #tpu.memory_space<vmem>>, %arg4: memref<1x64xf32, #tpu.memory_space<vmem>>, %arg5: memref<64x128xf32, #tpu.memory_space<vmem>>, %arg6: memref<1x128xf32, #tpu.memory_space<vmem>>, %arg7: memref<128x1024xf32, #tpu.memory_space<vmem>>, %arg8: memref<1x1024xf32, #tpu.memory_space<vmem>>, %arg9: memref<1x1x1024xf32, #tpu.memory_space<vmem>>, %arg10: memref<8x1024xf32, #tpu.memory_space<vmem>>) attributes {dimension_semantics = [#tpu.dimension_semantics<parallel>, #tpu.dimension_semantics<arbitrary>], iteration_bounds = array<i64: 2, 1>, scalar_prefetch = 0 : i64, scratch_operands = 1 : i64, tpu.core_type = #tpu.core_type<tc>, window_params = [{transform_indices = @transform_0, window_bounds = array<i64: 1, 16, 8>}, {pipeline_mode = #tpu.pipeline_mode<synchronous>, transform_indices = @transform_1, window_bounds = array<i64: 8, 64>}, {pipeline_mode = #tpu.pipeline_mode<synchronous>, transform_indices = @transform_2, window_bounds = array<i64: 1, 64>}, {pipeline_mode = #tpu.pipeline_mode<synchronous>, transform_indices = @transform_3, window_bounds = array<i64: 64, 128>}, {pipeline_mode = #tpu.pipeline_mode<synchronous>, transform_indices = @transform_4, window_bounds = array<i64: 1, 128>}, {pipeline_mode = #tpu.pipeline_mode<synchronous>, transform_indices = @transform_5, window_bounds = array<i64: 128, 1024>}, {pipeline_mode = #tpu.pipeline_mode<synchronous>, transform_indices = @transform_6, window_bounds = array<i64: 1, 1024>}, {transform_indices = @transform_7, window_bounds = array<i64: 1, 1, 1024>}]} {
    %c0_i32 = arith.constant 0 : i32
    %0 = arith.cmpi eq, %arg1, %c0_i32 : i32
    %1 = arith.extui %0 : i1 to i32
    %c0_i32_0 = arith.constant 0 : i32
    %2 = arith.cmpi ne, %1, %c0_i32_0 : i32
    scf.if %2 {
      %cst_24 = arith.constant 0xFF800000 : f32
      %29 = vector.broadcast %cst_24 : f32 to vector<8x1024xf32>
      %c0_25 = arith.constant 0 : index
      %c0_26 = arith.constant 0 : index
      %30 = vector.load %arg10[%c0_25, %c0_26] : memref<8x1024xf32, #tpu.memory_space<vmem>>, vector<8x1024xf32>
      tpu.vector_store %arg10[%c0_25, %c0_26], %29 {strides = array<i32>} : memref<8x1024xf32, #tpu.memory_space<vmem>>, vector<8x1024xf32>,
    } else {
    }
    %c0 = arith.constant 0 : index
    %c0_1 = arith.constant 0 : index
    %c0_2 = arith.constant 0 : index
    %3 = vector.load %arg2[%c0, %c0_1, %c0_2] : memref<1x16x8xf32, #tpu.memory_space<vmem>>, vector<1x16x8xf32>
    %4 = vector.shape_cast %3 : vector<1x16x8xf32> to vector<16x8xf32>
    %c0_3 = arith.constant 0 : index
    %c0_4 = arith.constant 0 : index
    %5 = vector.load %arg3[%c0_3, %c0_4] : memref<8x64xf32, #tpu.memory_space<vmem>>, vector<8x64xf32>
    %cst = arith.constant dense<0.000000e+00> : vector<16x64xf32>
    %6 = tpu.matmul %4, %5, %cst {dimension_numbers = #tpu.dot_dimension_numbers<[1], [0], [0], [1], [0, 0, 1, 1], [], []>} : vector<16x8xf32>, vector<8x64xf32>, vector<16x64xf32> -> vector<16x64xf32>
    %c0_5 = arith.constant 0 : index
    %c0_6 = arith.constant 0 : index
    %7 = vector.load %arg4[%c0_5, %c0_6] : memref<1x64xf32, #tpu.memory_space<vmem>>, vector<1x64xf32>
    %8 = vector.broadcast %7 : vector<1x64xf32> to vector<16x64xf32>
    %9 = arith.addf %6, %8 : vector<16x64xf32>
    %cst_7 = arith.constant 0.000000e+00 : f32
    %10 = vector.broadcast %cst_7 : f32 to vector<16x64xf32>
    %11 = arith.maximumf %9, %10 : vector<16x64xf32>
    %c0_8 = arith.constant 0 : index
    %c0_9 = arith.constant 0 : index
    %12 = vector.load %arg5[%c0_8, %c0_9] : memref<64x128xf32, #tpu.memory_space<vmem>>, vector<64x128xf32>
    %cst_10 = arith.constant dense<0.000000e+00> : vector<16x128xf32>
    %13 = tpu.matmul %11, %12, %cst_10 {dimension_numbers = #tpu.dot_dimension_numbers<[1], [0], [0], [1], [0, 0, 1, 1], [], []>} : vector<16x64xf32>, vector<64x128xf32>, vector<16x128xf32> -> vector<16x128xf32>
    %c0_11 = arith.constant 0 : index
    %c0_12 = arith.constant 0 : index
    %14 = vector.load %arg6[%c0_11, %c0_12] : memref<1x128xf32, #tpu.memory_space<vmem>>, vector<1x128xf32>
    %15 = vector.broadcast %14 : vector<1x128xf32> to vector<16x128xf32>
    %16 = arith.addf %13, %15 : vector<16x128xf32>
    %cst_13 = arith.constant 0.000000e+00 : f32
    %17 = vector.broadcast %cst_13 : f32 to vector<16x128xf32>
    %18 = arith.maximumf %16, %17 : vector<16x128xf32>
    %c0_14 = arith.constant 0 : index
    %c0_15 = arith.constant 0 : index
    %19 = vector.load %arg7[%c0_14, %c0_15] : memref<128x1024xf32, #tpu.memory_space<vmem>>, vector<128x1024xf32>
    %cst_16 = arith.constant dense<0.000000e+00> : vector<16x1024xf32>
    %20 = tpu.matmul %18, %19, %cst_16 {dimension_numbers = #tpu.dot_dimension_numbers<[1], [0], [0], [1], [0, 0, 1, 1], [], []>} : vector<16x128xf32>, vector<128x1024xf32>, vector<16x1024xf32> -> vector<16x1024xf32>
    %21 = vector.shape_cast %20 : vector<16x1024xf32> to vector<2x8x1024xf32>
    %cst_17 = arith.constant dense<0xFF800000> : vector<8x1024xf32>
    %22 = vector.multi_reduction <maximumf>, %21, %cst_17 [0] : vector<2x8x1024xf32> to vector<8x1024xf32>
    %c0_18 = arith.constant 0 : index
    %c0_19 = arith.constant 0 : index
    %23 = vector.load %arg10[%c0_18, %c0_19] : memref<8x1024xf32, #tpu.memory_space<vmem>>, vector<8x1024xf32>
    %24 = arith.maximumf %23, %22 : vector<8x1024xf32>
    %c0_20 = arith.constant 0 : index
    %c0_21 = arith.constant 0 : index
    %25 = vector.load %arg10[%c0_20, %c0_21] : memref<8x1024xf32, #tpu.memory_space<vmem>>, vector<8x1024xf32>
    tpu.vector_store %arg10[%c0_20, %c0_21], %24 {strides = array<i32>} : memref<8x1024xf32, #tpu.memory_space<vmem>>, vector<8x1024xf32>,
    %c0_i32_22 = arith.constant 0 : i32
    %26 = arith.cmpi eq, %arg1, %c0_i32_22 : i32
    %27 = arith.extui %26 : i1 to i32
    %c0_i32_23 = arith.constant 0 : i32
    %28 = arith.cmpi ne, %27, %c0_i32_23 : i32
    scf.if %28 {
      %c0_24 = arith.constant 0 : index
      %c0_25 = arith.constant 0 : index
      %29 = vector.load %arg10[%c0_24, %c0_25] : memref<8x1024xf32, #tpu.memory_space<vmem>>, vector<8x1024xf32>
      %cst_26 = arith.constant dense<0xFF800000> : vector<1024xf32>
      %30 = vector.multi_reduction <maximumf>, %29, %cst_26 [0] : vector<8x1024xf32> to vector<1024xf32>
      %31 = vector.shape_cast %30 : vector<1024xf32> to vector<1x1024xf32>
      %c0_27 = arith.constant 0 : index
      %c0_28 = arith.constant 0 : index
      %32 = vector.load %arg8[%c0_27, %c0_28] : memref<1x1024xf32, #tpu.memory_space<vmem>>, vector<1x1024xf32>
      %33 = arith.addf %31, %32 : vector<1x1024xf32>
      %cst_29 = arith.constant 0.000000e+00 : f32
      %34 = vector.broadcast %cst_29 : f32 to vector<1x1024xf32>
      %35 = arith.maximumf %33, %34 : vector<1x1024xf32>
      %c0_30 = arith.constant 0 : index
      %c0_31 = arith.constant 0 : index
      %c0_32 = arith.constant 0 : index
      %36 = vector.load %arg9[%c0_30, %c0_31, %c0_32] : memref<1x1x1024xf32, #tpu.memory_space<vmem>>, vector<1x1x1024xf32>
      %37 = vector.shape_cast %36 : vector<1x1x1024xf32> to vector<1x1024xf32>
      %38 = vector.shape_cast %35 : vector<1x1024xf32> to vector<1x1x1024xf32>
      tpu.vector_store %arg9[%c0_30, %c0_31, %c0_32], %38 {strides = array<i32>} : memref<1x1x1024xf32, #tpu.memory_space<vmem>>, vector<1x1x1024xf32>,
    } else {
    }
    return
  }
  func.func @transform_0(%arg0: i32, %arg1: i32) -> (i32, i32, i32) {
    %c0_i32 = arith.constant 0 : i32
    %c0_i32_0 = arith.constant 0 : i32
    return %arg0, %arg1, %c0_i32 : i32, i32, i32
  }
  func.func @transform_1(%arg0: i32, %arg1: i32) -> (i32, i32) {
    %c0_i32 = arith.constant 0 : i32
    %c0_i32_0 = arith.constant 0 : i32
    %c0_i32_1 = arith.constant 0 : i32
    return %c0_i32, %c0_i32_0 : i32, i32
  }
  func.func @transform_2(%arg0: i32, %arg1: i32) -> (i32, i32) {
    %c0_i32 = arith.constant 0 : i32
    %c0_i32_0 = arith.constant 0 : i32
    %c0_i32_1 = arith.constant 0 : i32
    return %c0_i32, %c0_i32_0 : i32, i32
  }
  func.func @transform_3(%arg0: i32, %arg1: i32) -> (i32, i32) {
    %c0_i32 = arith.constant 0 : i32
    %c0_i32_0 = arith.constant 0 : i32
    %c0_i32_1 = arith.constant 0 : i32
    return %c0_i32, %c0_i32_0 : i32, i32
  }
  func.func @transform_4(%arg0: i32, %arg1: i32) -> (i32, i32) {
    %c0_i32 = arith.constant 0 : i32
    %c0_i32_0 = arith.constant 0 : i32
    %c0_i32_1 = arith.constant 0 : i32
    return %c0_i32, %c0_i32_0 : i32, i32
  }
  func.func @transform_5(%arg0: i32, %arg1: i32) -> (i32, i32) {
    %c0_i32 = arith.constant 0 : i32
    %c0_i32_0 = arith.constant 0 : i32
    %c0_i32_1 = arith.constant 0 : i32
    return %c0_i32, %c0_i32_0 : i32, i32
  }
  func.func @transform_6(%arg0: i32, %arg1: i32) -> (i32, i32) {
    %c0_i32 = arith.constant 0 : i32
    %c0_i32_0 = arith.constant 0 : i32
    %c0_i32_1 = arith.constant 0 : i32
    return %c0_i32, %c0_i32_0 : i32, i32
  }
  func.func @transform_7(%arg0: i32, %arg1: i32) -> (i32, i32, i32) {
    %c0_i32 = arith.constant 0 : i32
    %c0_i32_0 = arith.constant 0 : i32
    %c0_i32_1 = arith.constant 0 : i32
    return %arg0, %c0_i32, %c0_i32_0 : i32, i32, i32
  }
}

</mosaic_0001>

<llo_original>
// kernel: tpu_custom_call.1
$region0: #{tpu_custom_call.1}
  #allocation0 [shape = 'u32[]', space=smem, size = 0x4, offset = 0x4, fixed_abs, tag = 'smem constant byte address 0x4 - core index']
  #allocation1 [shape = 'u32[144,128]{1,0:T(1,128)}', space=vmem, size = 0x12000, scoped, tag = 'internal scratch']
  #allocation2 [shape = 'f32[8,1024]{1,0:T(8,128)}', space=vmem, size = 0x8000, scoped, tag = 'scratch operand']
  %s0 = inlined_call_operand.vmem [shape: f32[2,16,8], index: 0, kind: input, shape index: {}]
  %s1 = inlined_call_operand.vmem [shape: f32[8,64], index: 1, kind: input, shape index: {}]
  %s2 = inlined_call_operand.vmem [shape: f32[1,64], index: 2, kind: input, shape index: {}]
  %s3 = inlined_call_operand.hbm [shape: f32[64,128], index: 3, kind: input, shape index: {}]
  %s4 = inlined_call_operand.vmem [shape: f32[1,128], index: 4, kind: input, shape index: {}]
  %s5 = inlined_call_operand.hbm [shape: f32[128,1024], index: 5, kind: input, shape index: {}]
  %s6 = inlined_call_operand.vmem [shape: f32[1,1024], index: 6, kind: input, shape index: {}]
  %s7 = inlined_call_operand.hbm [shape: f32[2,1,1024], index: 7, kind: output, shape index: {}]
  %s8 = sld [smem:[#allocation0]]
  $region77: #{tpu_custom_call.1} parent=0
    _
  %s10 = ssub.s32 1, %s8
  %s11 = scalar_select 0, %s10, %s8
  $region1: #{tpu_custom_call.1} parent=0
    #allocation3 [shape = 'u8[32768]{0}', space=vmem, size = 0x8000, scoped, tag = 'input window, operand 3, single buffered']
    #allocation4 [shape = 's32[2]{0}', space=sflag, size = 0x8, scoped, tag = 'scoped memory for tpu_custom_call.1']
    #allocation5 [shape = 's32[2]{0}', space=sflag, size = 0x8, scoped, tag = 'scoped memory for tpu_custom_call.1']
    #allocation6 [shape = 'u8[524288]{0}', space=vmem, size = 0x80000, scoped, tag = 'input window, operand 5, single buffered']
    #allocation7 [shape = 's32[1]{0}', space=sflag, size = 0x4, scoped, tag = 'scoped memory for tpu_custom_call.1']
    #allocation8 [shape = 'u8[8192]{0}', space=vmem, size = 0x2000, scoped, tag = 'output window, operand 0']
    %12 = vsyncpa [#allocation4], 0
    %13 = vsyncpa [#allocation7], 0
    %14 = vsyncpa [#allocation5], 0
    %s15 = scalar_lea.sflag [#allocation5], 1
    %16 = vsyncpa %s15, 0
    loop: start=0, step=1, limit=4
    $region2: #{tpu_custom_call.1} parent=1 // loop_pre_header
      _
    $region3: #{tpu_custom_call.1} parent=1 // loop_header
      %s18 = sphi 0, %s22
      %p19 = scmp.ge.s32.totalorder %s18, 4
      %s25 = sphi 0, %s37
      %s26 = sphi 0, %s33
      %s27 = sphi 0, %s25
      %s28 = sphi 0, %s26
      %s29 = sphi 0, %s27
      %s30 = sphi 0, %s28
      %s42 = sphi 0, %s44
      %s45 = sphi 0, %s42
      %s46 = sphi 0, %s45
      %s62 = sphi 0, %s46
      %s66 = sphi 0, %s66
      %s68 = sphi 0, %s66
      %s69 = sphi 0, %s68
      %s83 = sphi 0, %s69
      %s87 = sphi 0, %s87
      %s89 = sphi 0, %s87
      %s90 = sphi 0, %s89
      %s104 = sphi 0, %s90
      %s108 = sphi 0, %s108
      %s110 = sphi 0, %s108
      %s111 = sphi 0, %s110
      %s125 = sphi 0, %s111
      %s129 = sphi 0, %s129
      %s131 = sphi 0, %s129
      %s132 = sphi 0, %s131
      %s146 = sphi 0, %s132
      %s150 = sphi 0, %s150
      %s152 = sphi 0, %s150
      %s153 = sphi 0, %s152
      %s167 = sphi 0, %s153
      %s171 = sphi 0, %s171
      %s173 = sphi 0, %s171
      %s174 = sphi 0, %s173
      %s188 = sphi 0, %s174
      %s194 = sphi 0, %s196
      %s197 = sphi 0, %s194
      %s198 = sphi 0, %s197
      %s214 = sphi 0, %s198
    $region4: #{tpu_custom_call.1} parent=1 // loop_header_branch
      %21 = sbr.rel (%p19) target = $region8
    $region5: #{tpu_custom_call.1} parent=1 // loop_body
      %s23 = ssub.s32 %s18, 1
      %s24 = ssub.s32 %s18, 2
      %s31 = sadd.s32 1, %s26
      %p32 = scmp.ge.s32.totalorder %s31, 1
      %s33 = scalar_select %p32, 0, %s31
      %s34 = sadd.s32 1, %s25
      %s35 = scalar_select %p32, %s34, %s25
      %p36 = scmp.ge.s32.totalorder %s35, 2
      %s37 = scalar_select %p36, 0, %s35
      %s38 = ssub.s32 %s25, %s37
      %s39 = ssub.s32 %s26, %s33
      %s40 = sor.u32 %s38, %s39
      %p41 = scmp.eq.s32.totalorder %s40, 0
      %s43 = sadd.s32 %s42, 1
      %s44 = scalar_select %p41, %s42, %s43
      %p47 = pneg %p41
      %p48 = scmp.eq.s32.totalorder %s18, 1
      %p49 = por %p47, %p48
      %p50 = scmp.ne.s32.totalorder %s42, %s45
      %p51 = scmp.eq.s32.totalorder %s18, 0
      %p52 = por %p50, %p51
      %p53 = scmp.ne.s32.totalorder %s42, %s45
      %p54 = scmp.eq.s32.totalorder %s23, 1
      %p55 = por %p53, %p54
      %p56 = scmp.ne.s32.totalorder %s45, %s46
      %p57 = scmp.eq.s32.totalorder %s23, 0
      %p58 = por %p56, %p57
      %p59 = scmp.ne.s32.totalorder %s45, %s46
      %p60 = scmp.eq.s32.totalorder %s24, 1
      %p61 = por %p59, %p60
      %p63 = scmp.ne.s32.totalorder %s46, %s62
      %p64 = scmp.eq.s32.totalorder %s24, 0
      %p65 = por %p63, %p64
      %s67 = sadd.s32 %s66, 1
      %p70 = scmp.eq.s32.totalorder %s18, 1
      %p71 = scmp.ne.s32.totalorder %s66, %s68
      %p72 = scmp.eq.s32.totalorder %s18, 0
      %p73 = por %p71, %p72
      %p74 = scmp.ne.s32.totalorder %s66, %s68
      %p75 = scmp.eq.s32.totalorder %s23, 1
      %p76 = por %p74, %p75
      %p77 = scmp.ne.s32.totalorder %s68, %s69
      %p78 = scmp.eq.s32.totalorder %s23, 0
      %p79 = por %p77, %p78
      %p80 = scmp.ne.s32.totalorder %s68, %s69
      %p81 = scmp.eq.s32.totalorder %s24, 1
      %p82 = por %p80, %p81
      %p84 = scmp.ne.s32.totalorder %s69, %s83
      %p85 = scmp.eq.s32.totalorder %s24, 0
      %p86 = por %p84, %p85
      %s88 = sadd.s32 %s87, 1
      %p91 = scmp.eq.s32.totalorder %s18, 1
      %p92 = scmp.ne.s32.totalorder %s87, %s89
      %p93 = scmp.eq.s32.totalorder %s18, 0
      %p94 = por %p92, %p93
      %p95 = scmp.ne.s32.totalorder %s87, %s89
      %p96 = scmp.eq.s32.totalorder %s23, 1
      %p97 = por %p95, %p96
      %p98 = scmp.ne.s32.totalorder %s89, %s90
      %p99 = scmp.eq.s32.totalorder %s23, 0
      %p100 = por %p98, %p99
      %p101 = scmp.ne.s32.totalorder %s89, %s90
      %p102 = scmp.eq.s32.totalorder %s24, 1
      %p103 = por %p101, %p102
      %p105 = scmp.ne.s32.totalorder %s90, %s104
      %p106 = scmp.eq.s32.totalorder %s24, 0
      %p107 = por %p105, %p106
      %s109 = sadd.s32 %s108, 1
      %p112 = scmp.eq.s32.totalorder %s18, 1
      %p113 = scmp.ne.s32.totalorder %s108, %s110
      %p114 = scmp.eq.s32.totalorder %s18, 0
      %p115 = por %p113, %p114
      %p116 = scmp.ne.s32.totalorder %s108, %s110
      %p117 = scmp.eq.s32.totalorder %s23, 1
      %p118 = por %p116, %p117
      %p119 = scmp.ne.s32.totalorder %s110, %s111
      %p120 = scmp.eq.s32.totalorder %s23, 0
      %p121 = por %p119, %p120
      %p122 = scmp.ne.s32.totalorder %s110, %s111
      %p123 = scmp.eq.s32.totalorder %s24, 1
      %p124 = por %p122, %p123
      %p126 = scmp.ne.s32.totalorder %s111, %s125
      %p127 = scmp.eq.s32.totalorder %s24, 0
      %p128 = por %p126, %p127
      %s130 = sadd.s32 %s129, 1
      %p133 = scmp.eq.s32.totalorder %s18, 1
      %p134 = scmp.ne.s32.totalorder %s129, %s131
      %p135 = scmp.eq.s32.totalorder %s18, 0
      %p136 = por %p134, %p135
      %p137 = scmp.ne.s32.totalorder %s129, %s131
      %p138 = scmp.eq.s32.totalorder %s23, 1
      %p139 = por %p137, %p138
      %p140 = scmp.ne.s32.totalorder %s131, %s132
      %p141 = scmp.eq.s32.totalorder %s23, 0
      %p142 = por %p140, %p141
      %p143 = scmp.ne.s32.totalorder %s131, %s132
      %p144 = scmp.eq.s32.totalorder %s24, 1
      %p145 = por %p143, %p144
      %p147 = scmp.ne.s32.totalorder %s132, %s146
      %p148 = scmp.eq.s32.totalorder %s24, 0
      %p149 = por %p147, %p148
      %s151 = sadd.s32 %s150, 1
      %p154 = scmp.eq.s32.totalorder %s18, 1
      %p155 = scmp.ne.s32.totalorder %s150, %s152
      %p156 = scmp.eq.s32.totalorder %s18, 0
      %p157 = por %p155, %p156
      %p158 = scmp.ne.s32.totalorder %s150, %s152
      %p159 = scmp.eq.s32.totalorder %s23, 1
      %p160 = por %p158, %p159
      %p161 = scmp.ne.s32.totalorder %s152, %s153
      %p162 = scmp.eq.s32.totalorder %s23, 0
      %p163 = por %p161, %p162
      %p164 = scmp.ne.s32.totalorder %s152, %s153
      %p165 = scmp.eq.s32.totalorder %s24, 1
      %p166 = por %p164, %p165
      %p168 = scmp.ne.s32.totalorder %s153, %s167
      %p169 = scmp.eq.s32.totalorder %s24, 0
      %p170 = por %p168, %p169
      %s172 = sadd.s32 %s171, 1
      %p175 = scmp.eq.s32.totalorder %s18, 1
      %p176 = scmp.ne.s32.totalorder %s171, %s173
      %p177 = scmp.eq.s32.totalorder %s18, 0
      %p178 = por %p176, %p177
      %p179 = scmp.ne.s32.totalorder %s171, %s173
      %p180 = scmp.eq.s32.totalorder %s23, 1
      %p181 = por %p179, %p180
      %p182 = scmp.ne.s32.totalorder %s173, %s174
      %p183 = scmp.eq.s32.totalorder %s23, 0
      %p184 = por %p182, %p183
      %p185 = scmp.ne.s32.totalorder %s173, %s174
      %p186 = scmp.eq.s32.totalorder %s24, 1
      %p187 = por %p185, %p186
      %p189 = scmp.ne.s32.totalorder %s174, %s188
      %p190 = scmp.eq.s32.totalorder %s24, 0
      %p191 = por %p189, %p190
      %s192 = ssub.s32 %s25, %s37
      %p193 = scmp.eq.s32.totalorder %s192, 0
      %s195 = sadd.s32 %s194, 1
      %s196 = scalar_select %p193, %s194, %s195
      %p199 = pneg %p193
      %p200 = scmp.eq.s32.totalorder %s18, 1
      %p201 = por %p199, %p200
      %p202 = scmp.ne.s32.totalorder %s194, %s197
      %p203 = scmp.eq.s32.totalorder %s18, 0
      %p204 = por %p202, %p203
      %p205 = scmp.ne.s32.totalorder %s194, %s197
      %p206 = scmp.eq.s32.totalorder %s23, 1
      %p207 = por %p205, %p206
      %p208 = scmp.ne.s32.totalorder %s197, %s198
      %p209 = scmp.eq.s32.totalorder %s23, 0
      %p210 = por %p208, %p209
      %p211 = scmp.ne.s32.totalorder %s197, %s198
      %p212 = scmp.eq.s32.totalorder %s24, 1
      %p213 = por %p211, %p212
      %p215 = scmp.ne.s32.totalorder %s198, %s214
      %p216 = scmp.eq.s32.totalorder %s24, 0
      %p217 = por %p215, %p216
      %p218 = scmp.le.s32.totalorder 1, %s18
      %p219 = scmp.lt.s32.totalorder %s18, 3
      %p220 = pnand %p218, %p219
      %p221 = pneg %p220
      // Predicated region
      $region9: #{tpu_custom_call.1} parent=5 // pred_check
        _
      $region10: #{tpu_custom_call.1} parent=5 // pred_check_branch
        %223 = sbr.rel (%p220) target = $region12
      $region11: #{tpu_custom_call.1} parent=5 // pred_region
        %s224 = ssub.s32 %s18, 1
        // Predicated region
        $region13: #{tpu_custom_call.1} parent=11 // pred_check
          %p225 = pneg %p79
        $region14: #{tpu_custom_call.1} parent=11 // pred_check_branch
          %227 = sbr.rel (%p225) target = $region16
        $region15: #{tpu_custom_call.1} parent=11 // pred_region
          _
        $region16: #{tpu_custom_call.1} parent=11 // pred_fallthru
          _
        // Predicated region
        $region17: #{tpu_custom_call.1} parent=11 // pred_check
          %p228 = pneg %p100
        $region18: #{tpu_custom_call.1} parent=11 // pred_check_branch
          %230 = sbr.rel (%p228) target = $region20
        $region19: #{tpu_custom_call.1} parent=11 // pred_region
          _
        $region20: #{tpu_custom_call.1} parent=11 // pred_fallthru
          _
        // Predicated region
        $region21: #{tpu_custom_call.1} parent=11 // pred_check
          %p231 = pneg %p121
        $region22: #{tpu_custom_call.1} parent=11 // pred_check_branch
          %233 = sbr.rel (%p231) target = $region24
        $region23: #{tpu_custom_call.1} parent=11 // pred_region
          %s235 = ssub.s32 1024, 1024
          %236 = vsyncadd [#allocation4], %s235
          %s237 = sshll.u32 [#allocation3], 4
          %s238 = int_to_ptr.vmem [resolvable:$true] %s237
          %243 = dma.hbm_to_vmem [thread:$0]  %s3, 1024, %s238, [#allocation4], 128, 128, 8
        $region24: #{tpu_custom_call.1} parent=11 // pred_fallthru
          _
        // Predicated region
        $region25: #{tpu_custom_call.1} parent=11 // pred_check
          %p244 = pneg %p142
        $region26: #{tpu_custom_call.1} parent=11 // pred_check_branch
          %246 = sbr.rel (%p244) target = $region28
        $region27: #{tpu_custom_call.1} parent=11 // pred_region
          _
        $region28: #{tpu_custom_call.1} parent=11 // pred_fallthru
          _
        // Predicated region
        $region29: #{tpu_custom_call.1} parent=11 // pred_check
          %p247 = pneg %p163
        $region30: #{tpu_custom_call.1} parent=11 // pred_check_branch
          %249 = sbr.rel (%p247) target = $region32
        $region31: #{tpu_custom_call.1} parent=11 // pred_region
          %s251 = ssub.s32 16384, 16384
          %252 = vsyncadd [#allocation7], %s251
          %s253 = sshll.u32 [#allocation6], 4
          %s254 = int_to_ptr.vmem [resolvable:$true] %s253
          %259 = dma.hbm_to_vmem [thread:$0]  %s5, 16384, %s254, [#allocation7], 1024, 1024, 64
        $region32: #{tpu_custom_call.1} parent=11 // pred_fallthru
          _
        // Predicated region
        $region33: #{tpu_custom_call.1} parent=11 // pred_check
          %p260 = pneg %p184
        $region34: #{tpu_custom_call.1} parent=11 // pred_check_branch
          %262 = sbr.rel (%p260) target = $region36
        $region35: #{tpu_custom_call.1} parent=11 // pred_region
          _
        $region36: #{tpu_custom_call.1} parent=11 // pred_fallthru
          _
      $region12: #{tpu_custom_call.1} parent=5 // pred_fallthru
        _
      %p263 = scmp.lt.s32.totalorder %s18, 2
      // Predicated region
      $region37: #{tpu_custom_call.1} parent=5 // pred_check
        %p264 = pneg %p263
      $region38: #{tpu_custom_call.1} parent=5 // pred_check_branch
        %266 = sbr.rel (%p264) target = $region40
      $region39: #{tpu_custom_call.1} parent=5 // pred_region
        // Predicated region
        $region41: #{tpu_custom_call.1} parent=39 // pred_check
          %p267 = pneg %p52
        $region42: #{tpu_custom_call.1} parent=39 // pred_check_branch
          %269 = sbr.rel (%p267) target = $region44
        $region43: #{tpu_custom_call.1} parent=39 // pred_region
          %s270 = smul.u32 2, %s26
          %p271 = scmp.lt.s32.totalorder %s25, 1
          %s272 = scalar_select %p271, %s25, 1
          %p273 = scmp.lt.s32.totalorder %s270, 1
          %s274 = scalar_select %p273, %s270, 1
          %s275 = smul.addr %s272, 2
          %s276 = sadd.s32 %s274, %s275
          %s277 = smul.addr %s276, 8
          %s278 = scalar_lea.vmem %s0, %s277
          %s279 = smul.u32 2, %s26
        $region44: #{tpu_custom_call.1} parent=39 // pred_fallthru
          _
      $region40: #{tpu_custom_call.1} parent=5 // pred_fallthru
        _
      %p280 = scmp.le.s32.totalorder 1, %s18
      %p281 = scmp.lt.s32.totalorder %s18, 3
      %p282 = pnand %p280, %p281
      %p283 = pneg %p282
      // Predicated region
      $region45: #{tpu_custom_call.1} parent=5 // pred_check
        _
      $region46: #{tpu_custom_call.1} parent=5 // pred_check_branch
        %285 = sbr.rel (%p282) target = $region48
      $region47: #{tpu_custom_call.1} parent=5 // pred_region
        %s286 = ssub.s32 %s18, 1
        // Predicated region
        $region49: #{tpu_custom_call.1} parent=47 // pred_check
          %p287 = pneg %p121
        $region50: #{tpu_custom_call.1} parent=47 // pred_check_branch
          %289 = sbr.rel (%p287) target = $region52
        $region51: #{tpu_custom_call.1} parent=47 // pred_region
          %290 = dma.done [#allocation4], 1024
        $region52: #{tpu_custom_call.1} parent=47 // pred_fallthru
          _
        // Predicated region
        $region53: #{tpu_custom_call.1} parent=47 // pred_check
          %p291 = pneg %p163
        $region54: #{tpu_custom_call.1} parent=47 // pred_check_branch
          %293 = sbr.rel (%p291) target = $region56
        $region55: #{tpu_custom_call.1} parent=47 // pred_region
          %294 = dma.done [#allocation7], 16384
        $region56: #{tpu_custom_call.1} parent=47 // pred_fallthru
          _
        %s295 = smul.u32 2, %s28
        %p296 = scmp.lt.s32.totalorder %s27, 1
        %s297 = scalar_select %p296, %s27, 1
        %p298 = scmp.lt.s32.totalorder %s295, 1
        %s299 = scalar_select %p298, %s295, 1
        %s300 = smul.addr %s297, 2
        %s301 = sadd.s32 %s299, %s300
        %s302 = smul.addr %s301, 8
        %s303 = scalar_lea.vmem %s0, %s302
        %p304 = pneg %p58
        %p305 = pneg %p55
        %p306 = pneg %p79
        %p307 = pneg %p76
        %p308 = pneg %p100
        %p309 = pneg %p97
        %p310 = pneg %p121
        %p311 = pneg %p118
        %p312 = pneg %p142
        %p313 = pneg %p139
        %p314 = pneg %p163
        %p315 = pneg %p160
        %p316 = pneg %p184
        %p317 = pneg %p181
        %p318 = pneg %p210
        %p319 = pneg %p207
        %s320 = sand.u32 %s197, 1
        %s321 = scalar_lea.sflag [#allocation5], %s320
        %s322 = sand.u32 %s197, 1
        %s323 = smul.addr %s322, 8
        %s324 = scalar_lea.vmem [#allocation8], %s323
        %s325 = smul.u32 2, %s28
        %p326 = scmp.lt.s32.totalorder %s27, 1
        %s327 = scalar_select %p326, %s27, 1
        %p328 = scmp.lt.s32.totalorder %s325, 1
        %s329 = scalar_select %p328, %s325, 1
        %s330 = smul.addr %s327, 2
        %s331 = sadd.s32 %s329, %s330
        %s332 = smul.addr %s331, 8
        %s333 = scalar_lea.vmem %s0, %s332
        %s334 = smul.u32 2, %s28
        %p335 = scmp.eq.s32.totalorder %s28, 0
        // Predicated region
        $region57: #{tpu_custom_call.1} parent=47 // pred_check
          %p336 = pneg %p335
        $region58: #{tpu_custom_call.1} parent=47 // pred_check_branch
          %338 = sbr.rel (%p336) target = $region60
        $region59: #{tpu_custom_call.1} parent=47 // pred_region
          %339 = vst [vmem:[#allocation2] sm:$0xff] -inf
          %340 = vst [vmem:[#allocation2 + $0x8] sm:$0xff] -inf
          %341 = vst [vmem:[#allocation2 + $0x10] sm:$0xff] -inf
          %342 = vst [vmem:[#allocation2 + $0x18] sm:$0xff] -inf
          %343 = vst [vmem:[#allocation2 + $0x20] sm:$0xff] -inf
          %344 = vst [vmem:[#allocation2 + $0x28] sm:$0xff] -inf
          %345 = vst [vmem:[#allocation2 + $0x30] sm:$0xff] -inf
          %346 = vst [vmem:[#allocation2 + $0x38] sm:$0xff] -inf
        $region60: #{tpu_custom_call.1} parent=47 // pred_fallthru
          _
        %v347 = vld [vmem:[%s333] sm:$0xff]
        %v348 = vld [vmem:[%s333 + $0x8] sm:$0xff]
        %v349 = vld [vmem:[%s1] sm:$0xff]
        %v350 = vld [vmem:[%s2] sm:$0x1]
        %v352 = vlaneseq
        %v353 = vshrl.u32 %v352, 7
        %v354 = vsub.s32 0, %v353
        %v355 = vrot.slane %v350, %v354
        %vm357 = vcmask 64512
        %v359 = vsel %vm357, %v347, 0
        %v362 = vsel %vm357, %v348, 0
        %364 = vmatprep.subr.mxu0 0.0
        %365 = vmatpush1.msra.mxu0 0.0
        %366 = vmatprep.subr.mxu0 0.0
        %367 = vmatpush1.msra.mxu0 0.0
        %368 = vmatprep.subr.mxu0 0.0
        %369 = vmatpush1.msra.mxu0 0.0
        %370 = vmatprep.subr.mxu0 0.0
        %371 = vmatpush1.msra.mxu0 0.0
        %372 = vmatprep.subr.mxu0 0.0
        %373 = vmatpush1.msra.mxu0 0.0
        %374 = vmatprep.subr.mxu0 0.0
        %375 = vmatpush1.msra.mxu0 0.0
        %376 = vmatprep.subr.mxu0 0.0
        %377 = vmatpush1.msra.mxu0 0.0
        %378 = vmatprep.subr.mxu0 0.0
        %379 = vmatpush1.msra.mxu0 0.0
        %380 = vmatprep.subr.mxu0 0.0
        %381 = vmatpush1.msra.mxu0 0.0
        %382 = vmatprep.subr.mxu0 0.0
        %383 = vmatpush1.msra.mxu0 0.0
        %384 = vmatprep.subr.mxu0 0.0
        %385 = vmatpush1.msra.mxu0 0.0
        %386 = vmatprep.subr.mxu0 0.0
        %387 = vmatpush1.msra.mxu0 0.0
        %388 = vmatprep.subr.mxu0 0.0
        %389 = vmatpush1.msra.mxu0 0.0
        %390 = vmatprep.subr.mxu0 0.0
        %391 = vmatpush1.msra.mxu0 0.0
        %392 = vmatprep.subr.mxu0 0.0
        %393 = vmatpush1.msra.mxu0 0.0
        %394 = vmatprep.subr.mxu0 0.0
        %395 = vmatpush1.msra.mxu0 %v349
        %396 = vmatprep.subr.mxu0 0.0
        %397 = vmatpush2.msra.mxu0 0.0
        %398 = vmatprep.subr.mxu0 0.0
        %399 = vmatpush2.msra.mxu0 0.0
        %400 = vmatprep.subr.mxu0 0.0
        %401 = vmatpush2.msra.mxu0 0.0
        %402 = vmatprep.subr.mxu0 0.0
        %403 = vmatpush2.msra.mxu0 0.0
        %404 = vmatprep.subr.mxu0 0.0
        %405 = vmatpush2.msra.mxu0 0.0
        %406 = vmatprep.subr.mxu0 0.0
        %407 = vmatpush2.msra.mxu0 0.0
        %408 = vmatprep.subr.mxu0 0.0
        %409 = vmatpush2.msra.mxu0 0.0
        %410 = vmatprep.subr.mxu0 0.0
        %411 = vmatpush2.msra.mxu0 0.0
        %412 = vmatprep.subr.mxu0 0.0
        %413 = vmatpush2.msra.mxu0 0.0
        %414 = vmatprep.subr.mxu0 0.0
        %415 = vmatpush2.msra.mxu0 0.0
        %416 = vmatprep.subr.mxu0 0.0
        %417 = vmatpush2.msra.mxu0 0.0
        %418 = vmatprep.subr.mxu0 0.0
        %419 = vmatpush2.msra.mxu0 0.0
        %420 = vmatprep.subr.mxu0 0.0
        %421 = vmatpush2.msra.mxu0 0.0
        %422 = vmatprep.subr.mxu0 0.0
        %423 = vmatpush2.msra.mxu0 0.0
        %424 = vmatprep.subr.mxu0 0.0
        %425 = vmatpush2.msra.mxu0 0.0
        %426 = vmatprep.subr.mxu0 0.0
        %427 = vmatpush2.msra.mxu0 0.0
        %428 = vmatprep.mubr.f32.mxu0 0.0
        %429 = vmatmul.mubr.f32.gmra.mxu0 %v359
        %v430 = vpop.f32.mrf.mxu0
        %v431 = vadd.f32 %v355, %v430
        %v432 = vpop.f32.mrf.mxu0
        %433 = vmatprep.mubr.f32.mxu0 0.0
        %434 = vmatmul.mubr.f32.gmra.mxu0 %v362
        %v435 = vpop.f32.mrf.mxu0
        %v436 = vadd.f32 %v355, %v435
        %v437 = vpop.f32.mrf.mxu0
        %438 = vdwg.mxu0
        %v439 = vmax.f32 %v431, 0.0
        %v440 = vmax.f32 %v436, 0.0
        %v441 = vld [vmem:[#allocation3] sm:$0xff]
        %v442 = vld [vmem:[#allocation3 + $0x8] sm:$0xff]
        %v443 = vld [vmem:[#allocation3 + $0x10] sm:$0xff]
        %v444 = vld [vmem:[#allocation3 + $0x18] sm:$0xff]
        %v445 = vld [vmem:[#allocation3 + $0x20] sm:$0xff]
        %v446 = vld [vmem:[#allocation3 + $0x28] sm:$0xff]
        %v447 = vld [vmem:[#allocation3 + $0x30] sm:$0xff]
        %v448 = vld [vmem:[#allocation3 + $0x38] sm:$0xff]
        %v449 = vld [vmem:[%s4] sm:$0x1]
        %v451 = vlaneseq
        %v452 = vshrl.u32 %v451, 7
        %v453 = vsub.s32 0, %v452
        %v454 = vrot.slane %v449, %v453
        %vm456 = vcmask 523264
        %v458 = vsel %vm456, %v439, 0
        %v461 = vsel %vm456, %v440, 0
        %463 = vmatprep.subr.mxu0 0.0
        %464 = vmatpush1.msra.mxu0 0.0
        %465 = vmatprep.subr.mxu0 0.0
        %466 = vmatpush1.msra.mxu0 0.0
        %467 = vmatprep.subr.mxu0 0.0
        %468 = vmatpush1.msra.mxu0 0.0
        %469 = vmatprep.subr.mxu0 0.0
        %470 = vmatpush1.msra.mxu0 0.0
        %471 = vmatprep.subr.mxu0 0.0
        %472 = vmatpush1.msra.mxu0 0.0
        %473 = vmatprep.subr.mxu0 0.0
        %474 = vmatpush1.msra.mxu0 0.0
        %475 = vmatprep.subr.mxu0 0.0
        %476 = vmatpush1.msra.mxu0 0.0
        %477 = vmatprep.subr.mxu0 0.0
        %478 = vmatpush1.msra.mxu0 0.0
        %479 = vmatprep.subr.mxu0 0.0
        %480 = vmatpush1.msra.mxu0 %v448
        %481 = vmatprep.subr.mxu0 0.0
        %482 = vmatpush1.msra.mxu0 %v447
        %483 = vmatprep.subr.mxu0 0.0
        %484 = vmatpush1.msra.mxu0 %v446
        %485 = vmatprep.subr.mxu0 0.0
        %486 = vmatpush1.msra.mxu0 %v445
        %487 = vmatprep.subr.mxu0 0.0
        %488 = vmatpush1.msra.mxu0 %v444
        %489 = vmatprep.subr.mxu0 0.0
        %490 = vmatpush1.msra.mxu0 %v443
        %491 = vmatprep.subr.mxu0 0.0
        %492 = vmatpush1.msra.mxu0 %v442
        %493 = vmatprep.subr.mxu0 0.0
        %494 = vmatpush1.msra.mxu0 %v441
        %495 = vmatprep.subr.mxu0 0.0
        %496 = vmatpush2.msra.mxu0 0.0
        %497 = vmatprep.subr.mxu0 0.0
        %498 = vmatpush2.msra.mxu0 0.0
        %499 = vmatprep.subr.mxu0 0.0
        %500 = vmatpush2.msra.mxu0 0.0
        %501 = vmatprep.subr.mxu0 0.0
        %502 = vmatpush2.msra.mxu0 0.0
        %503 = vmatprep.subr.mxu0 0.0
        %504 = vmatpush2.msra.mxu0 0.0
        %505 = vmatprep.subr.mxu0 0.0
        %506 = vmatpush2.msra.mxu0 0.0
        %507 = vmatprep.subr.mxu0 0.0
        %508 = vmatpush2.msra.mxu0 0.0
        %509 = vmatprep.subr.mxu0 0.0
        %510 = vmatpush2.msra.mxu0 0.0
        %511 = vmatprep.subr.mxu0 0.0
        %512 = vmatpush2.msra.mxu0 0.0
        %513 = vmatprep.subr.mxu0 0.0
        %514 = vmatpush2.msra.mxu0 0.0
        %515 = vmatprep.subr.mxu0 0.0
        %516 = vmatpush2.msra.mxu0 0.0
        %517 = vmatprep.subr.mxu0 0.0
        %518 = vmatpush2.msra.mxu0 0.0
        %519 = vmatprep.subr.mxu0 0.0
        %520 = vmatpush2.msra.mxu0 0.0
        %521 = vmatprep.subr.mxu0 0.0
        %522 = vmatpush2.msra.mxu0 0.0
        %523 = vmatprep.subr.mxu0 0.0
        %524 = vmatpush2.msra.mxu0 0.0
        %525 = vmatprep.subr.mxu0 0.0
        %526 = vmatpush2.msra.mxu0 0.0
        %527 = vmatprep.mubr.f32.mxu0 0.0
        %528 = vmatmul.mubr.f32.gmra.mxu0 %v458
        %v529 = vpop.f32.mrf.mxu0
        %v530 = vadd.f32 %v454, %v529
        %v531 = vpop.f32.mrf.mxu0
        %532 = vmatprep.mubr.f32.mxu0 0.0
        %533 = vmatmul.mubr.f32.gmra.mxu0 %v461
        %v534 = vpop.f32.mrf.mxu0
        %v535 = vadd.f32 %v454, %v534
        %v536 = vpop.f32.mrf.mxu0
        %537 = vdwg.mxu0
        %v538 = vmax.f32 %v530, 0.0
        %v539 = vmax.f32 %v535, 0.0
        %v540 = vld [vmem:[#allocation6] sm:$0xff]
        %v541 = vld [vmem:[#allocation6 + $0x8] sm:$0xff]
        %v542 = vld [vmem:[#allocation6 + $0x10] sm:$0xff]
        %v543 = vld [vmem:[#allocation6 + $0x18] sm:$0xff]
        %v544 = vld [vmem:[#allocation6 + $0x20] sm:$0xff]
        %v545 = vld [vmem:[#allocation6 + $0x28] sm:$0xff]
        %v546 = vld [vmem:[#allocation6 + $0x30] sm:$0xff]
        %v547 = vld [vmem:[#allocation6 + $0x38] sm:$0xff]
        %v548 = vld [vmem:[#allocation6 + $0x40] sm:$0xff]
        %v549 = vld [vmem:[#allocation6 + $0x48] sm:$0xff]
        %v550 = vld [vmem:[#allocation6 + $0x50] sm:$0xff]
        %v551 = vld [vmem:[#allocation6 + $0x58] sm:$0xff]
        %v552 = vld [vmem:[#allocation6 + $0x60] sm:$0xff]
        %v553 = vld [vmem:[#allocation6 + $0x68] sm:$0xff]
        %v554 = vld [vmem:[#allocation6 + $0x70] sm:$0xff]
        %v555 = vld [vmem:[#allocation6 + $0x78] sm:$0xff]
        %v556 = vld [vmem:[#allocation6 + $0x80] sm:$0xff]
        %v557 = vld [vmem:[#allocation6 + $0x88] sm:$0xff]
        %v558 = vld [vmem:[#allocation6 + $0x90] sm:$0xff]
        %v559 = vld [vmem:[#allocation6 + $0x98] sm:$0xff]
        %v560 = vld [vmem:[#allocation6 + $0xa0] sm:$0xff]
        %v561 = vld [vmem:[#allocation6 + $0xa8] sm:$0xff]
        %v562 = vld [vmem:[#allocation6 + $0xb0] sm:$0xff]
        %v563 = vld [vmem:[#allocation6 + $0xb8] sm:$0xff]
        %v564 = vld [vmem:[#allocation6 + $0xc0] sm:$0xff]
        %v565 = vld [vmem:[#allocation6 + $0xc8] sm:$0xff]
        %v566 = vld [vmem:[#allocation6 + $0xd0] sm:$0xff]
        %v567 = vld [vmem:[#allocation6 + $0xd8] sm:$0xff]
        %v568 = vld [vmem:[#allocation6 + $0xe0] sm:$0xff]
        %v569 = vld [vmem:[#allocation6 + $0xe8] sm:$0xff]
        %v570 = vld [vmem:[#allocation6 + $0xf0] sm:$0xff]
        %v571 = vld [vmem:[#allocation6 + $0xf8] sm:$0xff]
        %v572 = vld [vmem:[#allocation6 + $0x100] sm:$0xff]
        %v573 = vld [vmem:[#allocation6 + $0x108] sm:$0xff]
        %v574 = vld [vmem:[#allocation6 + $0x110] sm:$0xff]
        %v575 = vld [vmem:[#allocation6 + $0x118] sm:$0xff]
        %v576 = vld [vmem:[#allocation6 + $0x120] sm:$0xff]
        %v577 = vld [vmem:[#allocation6 + $0x128] sm:$0xff]
        %v578 = vld [vmem:[#allocation6 + $0x130] sm:$0xff]
        %v579 = vld [vmem:[#allocation6 + $0x138] sm:$0xff]
        %v580 = vld [vmem:[#allocation6 + $0x140] sm:$0xff]
        %v581 = vld [vmem:[#allocation6 + $0x148] sm:$0xff]
        %v582 = vld [vmem:[#allocation6 + $0x150] sm:$0xff]
        %v583 = vld [vmem:[#allocation6 + $0x158] sm:$0xff]
        %v584 = vld [vmem:[#allocation6 + $0x160] sm:$0xff]
        %v585 = vld [vmem:[#allocation6 + $0x168] sm:$0xff]
        %v586 = vld [vmem:[#allocation6 + $0x170] sm:$0xff]
        %v587 = vld [vmem:[#allocation6 + $0x178] sm:$0xff]
        %v588 = vld [vmem:[#allocation6 + $0x180] sm:$0xff]
        %v589 = vld [vmem:[#allocation6 + $0x188] sm:$0xff]
        %v590 = vld [vmem:[#allocation6 + $0x190] sm:$0xff]
        %v591 = vld [vmem:[#allocation6 + $0x198] sm:$0xff]
        %v592 = vld [vmem:[#allocation6 + $0x1a0] sm:$0xff]
        %v593 = vld [vmem:[#allocation6 + $0x1a8] sm:$0xff]
        %v594 = vld [vmem:[#allocation6 + $0x1b0] sm:$0xff]
        %v595 = vld [vmem:[#allocation6 + $0x1b8] sm:$0xff]
        %v596 = vld [vmem:[#allocation6 + $0x1c0] sm:$0xff]
        %v597 = vld [vmem:[#allocation6 + $0x1c8] sm:$0xff]
        %v598 = vld [vmem:[#allocation6 + $0x1d0] sm:$0xff]
        %v599 = vld [vmem:[#allocation6 + $0x1d8] sm:$0xff]
        %v600 = vld [vmem:[#allocation6 + $0x1e0] sm:$0xff]
        %v601 = vld [vmem:[#allocation6 + $0x1e8] sm:$0xff]
        %v602 = vld [vmem:[#allocation6 + $0x1f0] sm:$0xff]
        %v603 = vld [vmem:[#allocation6 + $0x1f8] sm:$0xff]
        %v604 = vld [vmem:[#allocation6 + $0x200] sm:$0xff]
        %v605 = vld [vmem:[#allocation6 + $0x208] sm:$0xff]
        %v606 = vld [vmem:[#allocation6 + $0x210] sm:$0xff]
        %v607 = vld [vmem:[#allocation6 + $0x218] sm:$0xff]
        %v608 = vld [vmem:[#allocation6 + $0x220] sm:$0xff]
        %v609 = vld [vmem:[#allocation6 + $0x228] sm:$0xff]
        %v610 = vld [vmem:[#allocation6 + $0x230] sm:$0xff]
        %v611 = vld [vmem:[#allocation6 + $0x238] sm:$0xff]
        %v612 = vld [vmem:[#allocation6 + $0x240] sm:$0xff]
        %v613 = vld [vmem:[#allocation6 + $0x248] sm:$0xff]
        %v614 = vld [vmem:[#allocation6 + $0x250] sm:$0xff]
        %v615 = vld [vmem:[#allocation6 + $0x258] sm:$0xff]
        %v616 = vld [vmem:[#allocation6 + $0x260] sm:$0xff]
        %v617 = vld [vmem:[#allocation6 + $0x268] sm:$0xff]
        %v618 = vld [vmem:[#allocation6 + $0x270] sm:$0xff]
        %v619 = vld [vmem:[#allocation6 + $0x278] sm:$0xff]
        %v620 = vld [vmem:[#allocation6 + $0x280] sm:$0xff]
        %v621 = vld [vmem:[#allocation6 + $0x288] sm:$0xff]
        %v622 = vld [vmem:[#allocation6 + $0x290] sm:$0xff]
        %v623 = vld [vmem:[#allocation6 + $0x298] sm:$0xff]
        %v624 = vld [vmem:[#allocation6 + $0x2a0] sm:$0xff]
        %v625 = vld [vmem:[#allocation6 + $0x2a8] sm:$0xff]
        %v626 = vld [vmem:[#allocation6 + $0x2b0] sm:$0xff]
        %v627 = vld [vmem:[#allocation6 + $0x2b8] sm:$0xff]
        %v628 = vld [vmem:[#allocation6 + $0x2c0] sm:$0xff]
        %v629 = vld [vmem:[#allocation6 + $0x2c8] sm:$0xff]
        %v630 = vld [vmem:[#allocation6 + $0x2d0] sm:$0xff]
        %v631 = vld [vmem:[#allocation6 + $0x2d8] sm:$0xff]
        %v632 = vld [vmem:[#allocation6 + $0x2e0] sm:$0xff]
        %v633 = vld [vmem:[#allocation6 + $0x2e8] sm:$0xff]
        %v634 = vld [vmem:[#allocation6 + $0x2f0] sm:$0xff]
        %v635 = vld [vmem:[#allocation6 + $0x2f8] sm:$0xff]
        %v636 = vld [vmem:[#allocation6 + $0x300] sm:$0xff]
        %v637 = vld [vmem:[#allocation6 + $0x308] sm:$0xff]
        %v638 = vld [vmem:[#allocation6 + $0x310] sm:$0xff]
        %v639 = vld [vmem:[#allocation6 + $0x318] sm:$0xff]
        %v640 = vld [vmem:[#allocation6 + $0x320] sm:$0xff]
        %v641 = vld [vmem:[#allocation6 + $0x328] sm:$0xff]
        %v642 = vld [vmem:[#allocation6 + $0x330] sm:$0xff]
        %v643 = vld [vmem:[#allocation6 + $0x338] sm:$0xff]
        %v644 = vld [vmem:[#allocation6 + $0x340] sm:$0xff]
        %v645 = vld [vmem:[#allocation6 + $0x348] sm:$0xff]
        %v646 = vld [vmem:[#allocation6 + $0x350] sm:$0xff]
        %v647 = vld [vmem:[#allocation6 + $0x358] sm:$0xff]
        %v648 = vld [vmem:[#allocation6 + $0x360] sm:$0xff]
        %v649 = vld [vmem:[#allocation6 + $0x368] sm:$0xff]
        %v650 = vld [vmem:[#allocation6 + $0x370] sm:$0xff]
        %v651 = vld [vmem:[#allocation6 + $0x378] sm:$0xff]
        %v652 = vld [vmem:[#allocation6 + $0x380] sm:$0xff]
        %v653 = vld [vmem:[#allocation6 + $0x388] sm:$0xff]
        %v654 = vld [vmem:[#allocation6 + $0x390] sm:$0xff]
        %v655 = vld [vmem:[#allocation6 + $0x398] sm:$0xff]
        %v656 = vld [vmem:[#allocation6 + $0x3a0] sm:$0xff]
        %v657 = vld [vmem:[#allocation6 + $0x3a8] sm:$0xff]
        %v658 = vld [vmem:[#allocation6 + $0x3b0] sm:$0xff]
        %v659 = vld [vmem:[#allocation6 + $0x3b8] sm:$0xff]
        %v660 = vld [vmem:[#allocation6 + $0x3c0] sm:$0xff]
        %v661 = vld [vmem:[#allocation6 + $0x3c8] sm:$0xff]
        %v662 = vld [vmem:[#allocation6 + $0x3d0] sm:$0xff]
        %v663 = vld [vmem:[#allocation6 + $0x3d8] sm:$0xff]
        %v664 = vld [vmem:[#allocation6 + $0x3e0] sm:$0xff]
        %v665 = vld [vmem:[#allocation6 + $0x3e8] sm:$0xff]
        %v666 = vld [vmem:[#allocation6 + $0x3f0] sm:$0xff]
        %v667 = vld [vmem:[#allocation6 + $0x3f8] sm:$0xff]
        %668 = vmatprep.subr.mxu0 %v661
        %669 = vmatpush1.msra.mxu0 %v660
        %670 = vmatprep.subr.mxu0 %v653
        %671 = vmatpush1.msra.mxu0 %v652
        %672 = vmatprep.subr.mxu0 %v645
        %673 = vmatpush1.msra.mxu0 %v644
        %674 = vmatprep.subr.mxu0 %v637
        %675 = vmatpush1.msra.mxu0 %v636
        %676 = vmatprep.subr.mxu0 %v629
        %677 = vmatpush1.msra.mxu0 %v628
        %678 = vmatprep.subr.mxu0 %v621
        %679 = vmatpush1.msra.mxu0 %v620
        %680 = vmatprep.subr.mxu0 %v613
        %681 = vmatpush1.msra.mxu0 %v612
        %682 = vmatprep.subr.mxu0 %v605
        %683 = vmatpush1.msra.mxu0 %v604
        %684 = vmatprep.subr.mxu0 %v597
        %685 = vmatpush1.msra.mxu0 %v596
        %686 = vmatprep.subr.mxu0 %v589
        %687 = vmatpush1.msra.mxu0 %v588
        %688 = vmatprep.subr.mxu0 %v581
        %689 = vmatpush1.msra.mxu0 %v580
        %690 = vmatprep.subr.mxu0 %v573
        %691 = vmatpush1.msra.mxu0 %v572
        %692 = vmatprep.subr.mxu0 %v565
        %693 = vmatpush1.msra.mxu0 %v564
        %694 = vmatprep.subr.mxu0 %v557
        %695 = vmatpush1.msra.mxu0 %v556
        %696 = vmatprep.subr.mxu0 %v549
        %697 = vmatpush1.msra.mxu0 %v548
        %698 = vmatprep.subr.mxu0 %v541
        %699 = vmatpush1.msra.mxu0 %v540
        %700 = vmatprep.subr.mxu0 0.0
        %701 = vmatpush2.msra.mxu0 0.0
        %702 = vmatprep.subr.mxu0 0.0
        %703 = vmatpush2.msra.mxu0 0.0
        %704 = vmatprep.subr.mxu0 0.0
        %705 = vmatpush2.msra.mxu0 0.0
        %706 = vmatprep.subr.mxu0 0.0
        %707 = vmatpush2.msra.mxu0 0.0
        %708 = vmatprep.subr.mxu0 0.0
        %709 = vmatpush2.msra.mxu0 0.0
        %710 = vmatprep.subr.mxu0 0.0
        %711 = vmatpush2.msra.mxu0 0.0
        %712 = vmatprep.subr.mxu0 0.0
        %713 = vmatpush2.msra.mxu0 0.0
        %714 = vmatprep.subr.mxu0 0.0
        %715 = vmatpush2.msra.mxu0 0.0
        %716 = vmatprep.subr.mxu0 0.0
        %717 = vmatpush2.msra.mxu0 0.0
        %718 = vmatprep.subr.mxu0 0.0
        %719 = vmatpush2.msra.mxu0 0.0
        %720 = vmatprep.subr.mxu0 0.0
        %721 = vmatpush2.msra.mxu0 0.0
        %722 = vmatprep.subr.mxu0 0.0
        %723 = vmatpush2.msra.mxu0 0.0
        %724 = vmatprep.subr.mxu0 0.0
        %725 = vmatpush2.msra.mxu0 0.0
        %726 = vmatprep.subr.mxu0 0.0
        %727 = vmatpush2.msra.mxu0 0.0
        %728 = vmatprep.subr.mxu0 0.0
        %729 = vmatpush2.msra.mxu0 0.0
        %730 = vmatprep.subr.mxu0 0.0
        %731 = vmatpush2.msra.mxu0 0.0
        %732 = vmatprep.mubr.f32.mxu0 0.0
        %733 = vmatmul.mubr.f32.gmra.mxu0 %v538
        %v734 = vpop.f32.mrf.mxu0
        %v735 = vadd.f32 0.0, %v734
        %v736 = vpop.f32.mrf.mxu0
        %v737 = vadd.f32 0.0, %v736
        %738 = vmatprep.mubr.f32.mxu0 0.0
        %739 = vmatmul.mubr.f32.gmra.mxu0 %v539
        %v740 = vpop.f32.mrf.mxu0
        %v741 = vadd.f32 0.0, %v740
        %v742 = vpop.f32.mrf.mxu0
        %v743 = vadd.f32 0.0, %v742
        %744 = vdwg.mxu0
        %745 = vmatprep.subr.mxu0 %v663
        %746 = vmatpush1.msra.mxu0 %v662
        %747 = vmatprep.subr.mxu0 %v655
        %748 = vmatpush1.msra.mxu0 %v654
        %749 = vmatprep.subr.mxu0 %v647
        %750 = vmatpush1.msra.mxu0 %v646
        %751 = vmatprep.subr.mxu0 %v639
        %752 = vmatpush1.msra.mxu0 %v638
        %753 = vmatprep.subr.mxu0 %v631
        %754 = vmatpush1.msra.mxu0 %v630
        %755 = vmatprep.subr.mxu0 %v623
        %756 = vmatpush1.msra.mxu0 %v622
        %757 = vmatprep.subr.mxu0 %v615
        %758 = vmatpush1.msra.mxu0 %v614
        %759 = vmatprep.subr.mxu0 %v607
        %760 = vmatpush1.msra.mxu0 %v606
        %761 = vmatprep.subr.mxu0 %v599
        %762 = vmatpush1.msra.mxu0 %v598
        %763 = vmatprep.subr.mxu0 %v591
        %764 = vmatpush1.msra.mxu0 %v590
        %765 = vmatprep.subr.mxu0 %v583
        %766 = vmatpush1.msra.mxu0 %v582
        %767 = vmatprep.subr.mxu0 %v575
        %768 = vmatpush1.msra.mxu0 %v574
        %769 = vmatprep.subr.mxu0 %v567
        %770 = vmatpush1.msra.mxu0 %v566
        %771 = vmatprep.subr.mxu0 %v559
        %772 = vmatpush1.msra.mxu0 %v558
        %773 = vmatprep.subr.mxu0 %v551
        %774 = vmatpush1.msra.mxu0 %v550
        %775 = vmatprep.subr.mxu0 %v543
        %776 = vmatpush1.msra.mxu0 %v542
        %777 = vmatprep.subr.mxu0 0.0
        %778 = vmatpush2.msra.mxu0 0.0
        %779 = vmatprep.subr.mxu0 0.0
        %780 = vmatpush2.msra.mxu0 0.0
        %781 = vmatprep.subr.mxu0 0.0
        %782 = vmatpush2.msra.mxu0 0.0
        %783 = vmatprep.subr.mxu0 0.0
        %784 = vmatpush2.msra.mxu0 0.0
        %785 = vmatprep.subr.mxu0 0.0
        %786 = vmatpush2.msra.mxu0 0.0
        %787 = vmatprep.subr.mxu0 0.0
        %788 = vmatpush2.msra.mxu0 0.0
        %789 = vmatprep.subr.mxu0 0.0
        %790 = vmatpush2.msra.mxu0 0.0
        %791 = vmatprep.subr.mxu0 0.0
        %792 = vmatpush2.msra.mxu0 0.0
        %793 = vmatprep.subr.mxu0 0.0
        %794 = vmatpush2.msra.mxu0 0.0
        %795 = vmatprep.subr.mxu0 0.0
        %796 = vmatpush2.msra.mxu0 0.0
        %797 = vmatprep.subr.mxu0 0.0
        %798 = vmatpush2.msra.mxu0 0.0
        %799 = vmatprep.subr.mxu0 0.0
        %800 = vmatpush2.msra.mxu0 0.0
        %801 = vmatprep.subr.mxu0 0.0
        %802 = vmatpush2.msra.mxu0 0.0
        %803 = vmatprep.subr.mxu0 0.0
        %804 = vmatpush2.msra.mxu0 0.0
        %805 = vmatprep.subr.mxu0 0.0
        %806 = vmatpush2.msra.mxu0 0.0
        %807 = vmatprep.subr.mxu0 0.0
        %808 = vmatpush2.msra.mxu0 0.0
        %809 = vmatprep.mubr.f32.mxu0 0.0
        %810 = vmatmul.mubr.f32.gmra.mxu0 %v538
        %v811 = vpop.f32.mrf.mxu0
        %v812 = vadd.f32 0.0, %v811
        %v813 = vpop.f32.mrf.mxu0
        %v814 = vadd.f32 0.0, %v813
        %815 = vmatprep.mubr.f32.mxu0 0.0
        %816 = vmatmul.mubr.f32.gmra.mxu0 %v539
        %v817 = vpop.f32.mrf.mxu0
        %v818 = vadd.f32 0.0, %v817
        %v819 = vpop.f32.mrf.mxu0
        %v820 = vadd.f32 0.0, %v819
        %821 = vdwg.mxu0
        %822 = vmatprep.subr.mxu0 %v665
        %823 = vmatpush1.msra.mxu0 %v664
        %824 = vmatprep.subr.mxu0 %v657
        %825 = vmatpush1.msra.mxu0 %v656
        %826 = vmatprep.subr.mxu0 %v649
        %827 = vmatpush1.msra.mxu0 %v648
        %828 = vmatprep.subr.mxu0 %v641
        %829 = vmatpush1.msra.mxu0 %v640
        %830 = vmatprep.subr.mxu0 %v633
        %831 = vmatpush1.msra.mxu0 %v632
        %832 = vmatprep.subr.mxu0 %v625
        %833 = vmatpush1.msra.mxu0 %v624
        %834 = vmatprep.subr.mxu0 %v617
        %835 = vmatpush1.msra.mxu0 %v616
        %836 = vmatprep.subr.mxu0 %v609
        %837 = vmatpush1.msra.mxu0 %v608
        %838 = vmatprep.subr.mxu0 %v601
        %839 = vmatpush1.msra.mxu0 %v600
        %840 = vmatprep.subr.mxu0 %v593
        %841 = vmatpush1.msra.mxu0 %v592
        %842 = vmatprep.subr.mxu0 %v585
        %843 = vmatpush1.msra.mxu0 %v584
        %844 = vmatprep.subr.mxu0 %v577
        %845 = vmatpush1.msra.mxu0 %v576
        %846 = vmatprep.subr.mxu0 %v569
        %847 = vmatpush1.msra.mxu0 %v568
        %848 = vmatprep.subr.mxu0 %v561
        %849 = vmatpush1.msra.mxu0 %v560
        %850 = vmatprep.subr.mxu0 %v553
        %851 = vmatpush1.msra.mxu0 %v552
        %852 = vmatprep.subr.mxu0 %v545
        %853 = vmatpush1.msra.mxu0 %v544
        %854 = vmatprep.subr.mxu0 0.0
        %855 = vmatpush2.msra.mxu0 0.0
        %856 = vmatprep.subr.mxu0 0.0
        %857 = vmatpush2.msra.mxu0 0.0
        %858 = vmatprep.subr.mxu0 0.0
        %859 = vmatpush2.msra.mxu0 0.0
        %860 = vmatprep.subr.mxu0 0.0
        %861 = vmatpush2.msra.mxu0 0.0
        %862 = vmatprep.subr.mxu0 0.0
        %863 = vmatpush2.msra.mxu0 0.0
        %864 = vmatprep.subr.mxu0 0.0
        %865 = vmatpush2.msra.mxu0 0.0
        %866 = vmatprep.subr.mxu0 0.0
        %867 = vmatpush2.msra.mxu0 0.0
        %868 = vmatprep.subr.mxu0 0.0
        %869 = vmatpush2.msra.mxu0 0.0
        %870 = vmatprep.subr.mxu0 0.0
        %871 = vmatpush2.msra.mxu0 0.0
        %872 = vmatprep.subr.mxu0 0.0
        %873 = vmatpush2.msra.mxu0 0.0
        %874 = vmatprep.subr.mxu0 0.0
        %875 = vmatpush2.msra.mxu0 0.0
        %876 = vmatprep.subr.mxu0 0.0
        %877 = vmatpush2.msra.mxu0 0.0
        %878 = vmatprep.subr.mxu0 0.0
        %879 = vmatpush2.msra.mxu0 0.0
        %880 = vmatprep.subr.mxu0 0.0
        %881 = vmatpush2.msra.mxu0 0.0
        %882 = vmatprep.subr.mxu0 0.0
        %883 = vmatpush2.msra.mxu0 0.0
        %884 = vmatprep.subr.mxu0 0.0
        %885 = vmatpush2.msra.mxu0 0.0
        %886 = vmatprep.mubr.f32.mxu0 0.0
        %887 = vmatmul.mubr.f32.gmra.mxu0 %v538
        %v888 = vpop.f32.mrf.mxu0
        %v889 = vadd.f32 0.0, %v888
        %v890 = vpop.f32.mrf.mxu0
        %v891 = vadd.f32 0.0, %v890
        %892 = vmatprep.mubr.f32.mxu0 0.0
        %893 = vmatmul.mubr.f32.gmra.mxu0 %v539
        %v894 = vpop.f32.mrf.mxu0
        %v895 = vadd.f32 0.0, %v894
        %v896 = vpop.f32.mrf.mxu0
        %v897 = vadd.f32 0.0, %v896
        %898 = vdwg.mxu0
        %899 = vmatprep.subr.mxu0 %v667
        %900 = vmatpush1.msra.mxu0 %v666
        %901 = vmatprep.subr.mxu0 %v659
        %902 = vmatpush1.msra.mxu0 %v658
        %903 = vmatprep.subr.mxu0 %v651
        %904 = vmatpush1.msra.mxu0 %v650
        %905 = vmatprep.subr.mxu0 %v643
        %906 = vmatpush1.msra.mxu0 %v642
        %907 = vmatprep.subr.mxu0 %v635
        %908 = vmatpush1.msra.mxu0 %v634
        %909 = vmatprep.subr.mxu0 %v627
        %910 = vmatpush1.msra.mxu0 %v626
        %911 = vmatprep.subr.mxu0 %v619
        %912 = vmatpush1.msra.mxu0 %v618
        %913 = vmatprep.subr.mxu0 %v611
        %914 = vmatpush1.msra.mxu0 %v610
        %915 = vmatprep.subr.mxu0 %v603
        %916 = vmatpush1.msra.mxu0 %v602
        %917 = vmatprep.subr.mxu0 %v595
        %918 = vmatpush1.msra.mxu0 %v594
        %919 = vmatprep.subr.mxu0 %v587
        %920 = vmatpush1.msra.mxu0 %v586
        %921 = vmatprep.subr.mxu0 %v579
        %922 = vmatpush1.msra.mxu0 %v578
        %923 = vmatprep.subr.mxu0 %v571
        %924 = vmatpush1.msra.mxu0 %v570
        %925 = vmatprep.subr.mxu0 %v563
        %926 = vmatpush1.msra.mxu0 %v562
        %927 = vmatprep.subr.mxu0 %v555
        %928 = vmatpush1.msra.mxu0 %v554
        %929 = vmatprep.subr.mxu0 %v547
        %930 = vmatpush1.msra.mxu0 %v546
        %931 = vmatprep.subr.mxu0 0.0
        %932 = vmatpush2.msra.mxu0 0.0
        %933 = vmatprep.subr.mxu0 0.0
        %934 = vmatpush2.msra.mxu0 0.0
        %935 = vmatprep.subr.mxu0 0.0
        %936 = vmatpush2.msra.mxu0 0.0
        %937 = vmatprep.subr.mxu0 0.0
        %938 = vmatpush2.msra.mxu0 0.0
        %939 = vmatprep.subr.mxu0 0.0
        %940 = vmatpush2.msra.mxu0 0.0
        %941 = vmatprep.subr.mxu0 0.0
        %942 = vmatpush2.msra.mxu0 0.0
        %943 = vmatprep.subr.mxu0 0.0
        %944 = vmatpush2.msra.mxu0 0.0
        %945 = vmatprep.subr.mxu0 0.0
        %946 = vmatpush2.msra.mxu0 0.0
        %947 = vmatprep.subr.mxu0 0.0
        %948 = vmatpush2.msra.mxu0 0.0
        %949 = vmatprep.subr.mxu0 0.0
        %950 = vmatpush2.msra.mxu0 0.0
        %951 = vmatprep.subr.mxu0 0.0
        %952 = vmatpush2.msra.mxu0 0.0
        %953 = vmatprep.subr.mxu0 0.0
        %954 = vmatpush2.msra.mxu0 0.0
        %955 = vmatprep.subr.mxu0 0.0
        %956 = vmatpush2.msra.mxu0 0.0
        %957 = vmatprep.subr.mxu0 0.0
        %958 = vmatpush2.msra.mxu0 0.0
        %959 = vmatprep.subr.mxu0 0.0
        %960 = vmatpush2.msra.mxu0 0.0
        %961 = vmatprep.subr.mxu0 0.0
        %962 = vmatpush2.msra.mxu0 0.0
        %963 = vmatprep.mubr.f32.mxu0 0.0
        %964 = vmatmul.mubr.f32.gmra.mxu0 %v538
        %v965 = vpop.f32.mrf.mxu0
        %v966 = vadd.f32 0.0, %v965
        %v967 = vpop.f32.mrf.mxu0
        %v968 = vadd.f32 0.0, %v967
        %969 = vmatprep.mubr.f32.mxu0 0.0
        %970 = vmatmul.mubr.f32.gmra.mxu0 %v539
        %v971 = vpop.f32.mrf.mxu0
        %v972 = vadd.f32 0.0, %v971
        %v973 = vpop.f32.mrf.mxu0
        %v974 = vadd.f32 0.0, %v973
        %975 = vdwg.mxu0
        %v976 = vmax.f32 %v735, %v741
        %v977 = vmax.f32 %v737, %v743
        %v978 = vmax.f32 %v812, %v818
        %v979 = vmax.f32 %v814, %v820
        %v980 = vmax.f32 %v889, %v895
        %v981 = vmax.f32 %v891, %v897
        %v982 = vmax.f32 %v966, %v972
        %v983 = vmax.f32 %v968, %v974
        %v984 = vld [vmem:[#allocation2] sm:$0xff]
        %v985 = vld [vmem:[#allocation2 + $0x8] sm:$0xff]
        %v986 = vld [vmem:[#allocation2 + $0x10] sm:$0xff]
        %v987 = vld [vmem:[#allocation2 + $0x18] sm:$0xff]
        %v988 = vld [vmem:[#allocation2 + $0x20] sm:$0xff]
        %v989 = vld [vmem:[#allocation2 + $0x28] sm:$0xff]
        %v990 = vld [vmem:[#allocation2 + $0x30] sm:$0xff]
        %v991 = vld [vmem:[#allocation2 + $0x38] sm:$0xff]
        %v992 = vmax.f32 %v984, %v976
        %v993 = vmax.f32 %v985, %v977
        %v994 = vmax.f32 %v986, %v978
        %v995 = vmax.f32 %v987, %v979
        %v996 = vmax.f32 %v988, %v980
        %v997 = vmax.f32 %v989, %v981
        %v998 = vmax.f32 %v990, %v982
        %v999 = vmax.f32 %v991, %v983
        %1000 = vst [vmem:[#allocation2] sm:$0xff] %v992
        %1001 = vst [vmem:[#allocation2 + $0x8] sm:$0xff] %v993
        %1002 = vst [vmem:[#allocation2 + $0x10] sm:$0xff] %v994
        %1003 = vst [vmem:[#allocation2 + $0x18] sm:$0xff] %v995
        %1004 = vst [vmem:[#allocation2 + $0x20] sm:$0xff] %v996
        %1005 = vst [vmem:[#allocation2 + $0x28] sm:$0xff] %v997
        %1006 = vst [vmem:[#allocation2 + $0x30] sm:$0xff] %v998
        %1007 = vst [vmem:[#allocation2 + $0x38] sm:$0xff] %v999
        // Predicated region
        $region61: #{tpu_custom_call.1} parent=47 // pred_check
          %p1008 = pneg %p335
        $region62: #{tpu_custom_call.1} parent=47 // pred_check_branch
          %1010 = sbr.rel (%p1008) target = $region64
        $region63: #{tpu_custom_call.1} parent=47 // pred_region
          %v1011 = vld [vmem:[#allocation2] sm:$0xff]
          %v1012 = vld [vmem:[#allocation2 + $0x8] sm:$0xff]
          %v1013 = vld [vmem:[#allocation2 + $0x10] sm:$0xff]
          %v1014 = vld [vmem:[#allocation2 + $0x18] sm:$0xff]
          %v1015 = vld [vmem:[#allocation2 + $0x20] sm:$0xff]
          %v1016 = vld [vmem:[#allocation2 + $0x28] sm:$0xff]
          %v1017 = vld [vmem:[#allocation2 + $0x30] sm:$0xff]
          %v1018 = vld [vmem:[#allocation2 + $0x38] sm:$0xff]
          %v1019 = vrot.slane %v1011, 4
          %v1020 = vmax.f32 %v1011, %v1019
          %v1021 = vrot.slane %v1020, 2
          %v1022 = vmax.f32 %v1020, %v1021
          %v1023 = vrot.slane %v1022, 1
          %v1024 = vmax.f32 %v1022, %v1023
          %v1025 = vrot.slane %v1012, 4
          %v1026 = vmax.f32 %v1012, %v1025
          %v1027 = vrot.slane %v1026, 2
          %v1028 = vmax.f32 %v1026, %v1027
          %v1029 = vrot.slane %v1028, 1
          %v1030 = vmax.f32 %v1028, %v1029
          %v1031 = vrot.slane %v1013, 4
          %v1032 = vmax.f32 %v1013, %v1031
          %v1033 = vrot.slane %v1032, 2
          %v1034 = vmax.f32 %v1032, %v1033
          %v1035 = vrot.slane %v1034, 1
          %v1036 = vmax.f32 %v1034, %v1035
          %v1037 = vrot.slane %v1014, 4
          %v1038 = vmax.f32 %v1014, %v1037
          %v1039 = vrot.slane %v1038, 2
          %v1040 = vmax.f32 %v1038, %v1039
          %v1041 = vrot.slane %v1040, 1
          %v1042 = vmax.f32 %v1040, %v1041
          %v1043 = vrot.slane %v1015, 4
          %v1044 = vmax.f32 %v1015, %v1043
          %v1045 = vrot.slane %v1044, 2
          %v1046 = vmax.f32 %v1044, %v1045
          %v1047 = vrot.slane %v1046, 1
          %v1048 = vmax.f32 %v1046, %v1047
          %v1049 = vrot.slane %v1016, 4
          %v1050 = vmax.f32 %v1016, %v1049
          %v1051 = vrot.slane %v1050, 2
          %v1052 = vmax.f32 %v1050, %v1051
          %v1053 = vrot.slane %v1052, 1
          %v1054 = vmax.f32 %v1052, %v1053
          %v1055 = vrot.slane %v1017, 4
          %v1056 = vmax.f32 %v1017, %v1055
          %v1057 = vrot.slane %v1056, 2
          %v1058 = vmax.f32 %v1056, %v1057
          %v1059 = vrot.slane %v1058, 1
          %v1060 = vmax.f32 %v1058, %v1059
          %v1061 = vrot.slane %v1018, 4
          %v1062 = vmax.f32 %v1018, %v1061
          %v1063 = vrot.slane %v1062, 2
          %v1064 = vmax.f32 %v1062, %v1063
          %v1065 = vrot.slane %v1064, 1
          %v1066 = vmax.f32 %v1064, %v1065
          %v1067 = vld [vmem:[%s6] sm:$0xff]
          %v1069 = vlaneseq
          %v1070 = vshrl.u32 %v1069, 7
          %v1071 = vsub.s32 0, %v1070
          %v1072 = vrot.slane %v1067, %v1071
          %v1073 = vlaneseq
          %v1074 = vshrl.u32 %v1073, 7
          %v1075 = vsub.s32 1, %v1074
          %v1076 = vrot.slane %v1067, %v1075
          %v1077 = vlaneseq
          %v1078 = vshrl.u32 %v1077, 7
          %v1079 = vsub.s32 2, %v1078
          %v1080 = vrot.slane %v1067, %v1079
          %v1081 = vlaneseq
          %v1082 = vshrl.u32 %v1081, 7
          %v1083 = vsub.s32 3, %v1082
          %v1084 = vrot.slane %v1067, %v1083
          %v1085 = vlaneseq
          %v1086 = vshrl.u32 %v1085, 7
          %v1087 = vsub.s32 4, %v1086
          %v1088 = vrot.slane %v1067, %v1087
          %v1089 = vlaneseq
          %v1090 = vshrl.u32 %v1089, 7
          %v1091 = vsub.s32 5, %v1090
          %v1092 = vrot.slane %v1067, %v1091
          %v1093 = vlaneseq
          %v1094 = vshrl.u32 %v1093, 7
          %v1095 = vsub.s32 6, %v1094
          %v1096 = vrot.slane %v1067, %v1095
          %v1097 = vlaneseq
          %v1098 = vshrl.u32 %v1097, 7
          %v1099 = vsub.s32 7, %v1098
          %v1100 = vrot.slane %v1067, %v1099
          %v1109 = vadd.f32 %v1024, %v1072
          %v1110 = vadd.f32 %v1030, %v1076
          %v1111 = vadd.f32 %v1036, %v1080
          %v1112 = vadd.f32 %v1042, %v1084
          %v1113 = vadd.f32 %v1048, %v1088
          %v1114 = vadd.f32 %v1054, %v1092
          %v1115 = vadd.f32 %v1060, %v1096
          %v1116 = vadd.f32 %v1066, %v1100
          %v1117 = vmax.f32 %v1109, 0.0
          %v1118 = vmax.f32 %v1110, 0.0
          %v1119 = vmax.f32 %v1111, 0.0
          %v1120 = vmax.f32 %v1112, 0.0
          %v1121 = vmax.f32 %v1113, 0.0
          %v1122 = vmax.f32 %v1114, 0.0
          %v1123 = vmax.f32 %v1115, 0.0
          %v1124 = vmax.f32 %v1116, 0.0
          %v1133 = vcombine.low %v1117, %v1118
          %v1134 = vcombine.low %v1119, %v1120
          %v1135 = vcombine.low %v1121, %v1122
          %v1136 = vcombine.low %v1123, %v1124
          %v1138 = vunpack.c.l.s4 1966171168
          %v1139 = vunpack.c.0.s8 %v1138
          %v1140 = vlaneseq
          %v1141 = vshrl.u32 %v1140, 7
          %v1142 = vsub.s32 %v1139, %v1141
          %v1143 = vrot.slane %v1133, %v1142
          %v1145 = vunpack.c.l.s4 1966171168
          %v1146 = vunpack.c.0.s8 %v1145
          %v1147 = vlaneseq
          %v1148 = vshrl.u32 %v1147, 7
          %v1149 = vsub.s32 %v1146, %v1148
          %v1150 = vrot.slane %v1134, %v1149
          %v1152 = vunpack.c.l.s4 1966171168
          %v1153 = vunpack.c.0.s8 %v1152
          %v1154 = vlaneseq
          %v1155 = vshrl.u32 %v1154, 7
          %v1156 = vsub.s32 %v1153, %v1155
          %v1157 = vrot.slane %v1135, %v1156
          %v1159 = vunpack.c.l.s4 1966171168
          %v1160 = vunpack.c.0.s8 %v1159
          %v1161 = vlaneseq
          %v1162 = vshrl.u32 %v1161, 7
          %v1163 = vsub.s32 %v1160, %v1162
          %v1164 = vrot.slane %v1136, %v1163
          %v1165 = vcombine.low %v1143, %v1150
          %v1166 = vcombine.low %v1157, %v1164
          %v1168 = vunpack.c.l.s4 1966171168
          %v1169 = vunpack.c.0.s8 %v1168
          %v1170 = vlaneseq
          %v1171 = vshrl.u32 %v1170, 7
          %v1172 = vsub.s32 %v1169, %v1171
          %v1173 = vrot.slane %v1165, %v1172
          %v1175 = vunpack.c.l.s4 1966171168
          %v1176 = vunpack.c.0.s8 %v1175
          %v1177 = vlaneseq
          %v1178 = vshrl.u32 %v1177, 7
          %v1179 = vsub.s32 %v1176, %v1178
          %v1180 = vrot.slane %v1166, %v1179
          %v1181 = vcombine.low %v1173, %v1180
          %1183 = vst [vmem:[%s324] sm:$0xff] %v1181
        $region64: #{tpu_custom_call.1} parent=47 // pred_fallthru
          _
        %s1184 = sand.u32 %s197, 1
        %s1185 = scalar_lea.sflag [#allocation5], %s1184
        %s1186 = sand.u32 %s197, 1
        %s1187 = smul.addr %s1186, 8
        %s1188 = scalar_lea.vmem [#allocation8], %s1187
        // Predicated region
        $region65: #{tpu_custom_call.1} parent=47 // pred_check
          %p1189 = pneg %p207
        $region66: #{tpu_custom_call.1} parent=47 // pred_check_branch
          %1191 = sbr.rel (%p1189) target = $region68
        $region67: #{tpu_custom_call.1} parent=47 // pred_region
          %s1193 = ssub.s32 128, 128
          %1194 = vsyncadd %s1185, %s1193
          %s1195 = smul.addr %s27, 8
          %s1196 = smul.addr %s1195, 16
          %s1197 = scalar_lea.hbm %s7, %s1196
          %s1199 = sshll.u32 %s1188, 4
          %s1200 = int_to_ptr.vmem [resolvable:$true] %s1199
          %1202 = dma.vmem_to_hbm [thread:$0]  %s1200, 128, %s1197, %s1185
        $region68: #{tpu_custom_call.1} parent=47 // pred_fallthru
          _
      $region48: #{tpu_custom_call.1} parent=5 // pred_fallthru
        _
      %p1203 = scmp.le.s32.totalorder 2, %s18
      // Predicated region
      $region69: #{tpu_custom_call.1} parent=5 // pred_check
        %p1204 = pneg %p1203
      $region70: #{tpu_custom_call.1} parent=5 // pred_check_branch
        %1206 = sbr.rel (%p1204) target = $region72
      $region71: #{tpu_custom_call.1} parent=5 // pred_region
        %s1207 = ssub.s32 %s18, 2
        // Predicated region
        $region73: #{tpu_custom_call.1} parent=71 // pred_check
          %p1208 = pneg %p213
        $region74: #{tpu_custom_call.1} parent=71 // pred_check_branch
          %1210 = sbr.rel (%p1208) target = $region76
        $region75: #{tpu_custom_call.1} parent=71 // pred_region
          %s1211 = sand.u32 %s198, 1
          %s1212 = scalar_lea.sflag [#allocation5], %s1211
          %s1213 = sand.u32 %s198, 1
          %s1214 = smul.addr %s1213, 8
          %s1215 = scalar_lea.vmem [#allocation8], %s1214
          %1216 = dma.done %s1212, 128
        $region76: #{tpu_custom_call.1} parent=71 // pred_fallthru
          _
      $region72: #{tpu_custom_call.1} parent=5 // pred_fallthru
        _
    $region6: #{tpu_custom_call.1} parent=1 // loop_footer
      %s22 = sadd.s32 1, %s18
    $region7: #{tpu_custom_call.1} parent=1 // loop_footer_branch
      %17 = sbr.rel target = $region3
    $region8: #{tpu_custom_call.1} parent=1 // loop_exit
      _
    %1217 = vsyncpa [#allocation4], 1
    %s1218 = scalar_lea.sflag [#allocation4], 1
    %1219 = vsyncpa %s1218, 1
    %1220 = vsyncpa [#allocation7], 1
    %1221 = vsyncpa [#allocation5], 1
    %s1222 = scalar_lea.sflag [#allocation5], 1
    %1223 = vsyncpa %s1222, 1

</llo_original>
